<compile_context>
chip_gen: v7x
topology: tpu7x:2x2x1
jax: 0.10.0
libtpu: 0.0.40
codegen_flags: <defaults>
</compile_context>

<pallas_src>
import functools

import numpy as np
import jax
import jax.numpy as jnp
from jax.experimental import pallas as pl
from jax.experimental.pallas import tpu as pltpu

LANE = 128  # f32 lane width


def _round_up(x, m):
    return ((x + m - 1) // m) * m


# -----------------------------------------------------------------------------
# Fused tiled kernel.
#   grid = (dst_tile d, src_tile s)  -- s innermost (reduction over sources)
#   step (0,0):  z_aug = h @ W_aug  (cols 0:64 = z, 64 = a_src.z, 65 = a_dst.z),
#                feat accumulator zeroed.
#   every step:  e = s_src + s_dst^T ; leaky_relu ; alpha = sigmoid(e)*adj_tile
#                feat[dst tile] += alpha^T @ z_aug[src tile]   (dim-0 contraction)
#   last step:   x = one_hot(drug1_idx) @ feat    (MXU gather)
#                out = relu(BN1( relu(BN0(x)) @ W_ll ))        (batch-stat BN)
# -----------------------------------------------------------------------------
def _gat_l_kernel(gat_out,
                  idx_ref, h_ref, w_aug_ref, adj_ref,
                  g0_ref, b0_ref, wll_ref, g1_ref, b1_ref,
                  out_ref,
                  z_scr, s_src_scr, s_dst_scr, feat_scr):
    d = pl.program_id(0)               # destination-node tile
    s = pl.program_id(1)               # source-node tile (innermost reduction)
    nd = pl.num_programs(0)
    ns = pl.num_programs(1)
    t = adj_ref.shape[0]               # square tile size (multiple of 128)
    eps = 1e-5

    # ---- one-time setup at the first grid step --------------------------------
    @pl.when(jnp.logical_and(d == 0, s == 0))
    def _():
        z_aug = jnp.dot(h_ref[...], w_aug_ref[...],
                        preferred_element_type=jnp.float32)        # [N_pad, 128]
        z_scr[...] = z_aug
        s_src_scr[...] = z_aug[:, gat_out:gat_out + 1]             # [N_pad, 1]
        s_dst_scr[...] = z_aug[:, gat_out + 1:gat_out + 2]         # [N_pad, 1]
        feat_scr[...] = jnp.zeros_like(feat_scr)

    src0 = pl.multiple_of(s * t, t)
    dst0 = pl.multiple_of(d * t, t)

    # ---- attention scores for this (src, dst) tile ----------------------------
    s_src = s_src_scr[pl.ds(src0, t), :]                           # [t, 1]
    s_dst = s_dst_scr[pl.ds(dst0, t), :]                           # [t, 1]
    e = s_src + jnp.transpose(s_dst)                               # [t_src, t_dst]
    e = jnp.where(e >= 0, e, 0.01 * e)                             # leaky_relu(0.01)
    alpha = jax.nn.sigmoid(e) * adj_ref[...].astype(jnp.float32)   # mask non-edges

    # feat[v] += sum_u alpha[u, v] * z_aug[u]  -- contract dim 0 directly on MXU
    z_src = z_scr[pl.ds(src0, t), :]                               # [t, 128]
    contrib = jax.lax.dot_general(
        alpha, z_src, dimension_numbers=(((0,), (0,)), ((), ())),
        preferred_element_type=jnp.float32)                        # [t, 128]
    cur = feat_scr[pl.ds(dst0, t), :]
    feat_scr[pl.ds(dst0, t), :] = cur + contrib

    # ---- fused head at the last grid step (feat fully accumulated) ------------
    @pl.when(jnp.logical_and(d == nd - 1, s == ns - 1))
    def _():
        m = out_ref.shape[0]
        n_pad = feat_scr.shape[0]

        # one-hot gather of drug1 rows on the MXU (replaces per-row copies)
        cols = jax.lax.broadcasted_iota(jnp.int32, (m, n_pad), 1)
        one_hot = (cols == idx_ref[...]).astype(jnp.float32)       # [M, N_pad]
        x = jnp.dot(one_hot, feat_scr[...],
                    preferred_element_type=jnp.float32)            # [M, 128]

        # BN(64, batch stats) -> ReLU    (padded lanes: gamma=beta=0 -> exactly 0)
        m0 = jnp.mean(x, axis=0, keepdims=True)
        v0 = jnp.mean((x - m0) ** 2, axis=0, keepdims=True)
        x = (x - m0) * jax.lax.rsqrt(v0 + eps) * g0_ref[...] + b0_ref[...]
        x = jnp.maximum(x, 0.0)

        # Linear(64->32) as a 128x128 padded matmul; b_ll folded away by BN1 below.
        y = jnp.dot(x, wll_ref[...], preferred_element_type=jnp.float32)  # [M, 128]

        # BN(32, batch stats) -> ReLU
        m1 = jnp.mean(y, axis=0, keepdims=True)
        v1 = jnp.mean((y - m1) ** 2, axis=0, keepdims=True)
        y = (y - m1) * jax.lax.rsqrt(v1 + eps) * g1_ref[...] + b1_ref[...]
        out_ref[...] = jnp.maximum(y, 0.0)                          # [M, 128]


# -----------------------------------------------------------------------------
# One-time parameter preparation (constant folding + 128-lane padding).
# -----------------------------------------------------------------------------
def prepare_params(params, lane=LANE):
    w_fc = params["w_fc"].astype(jnp.float32)        # [IN, 64]
    a_src = params["a_src"].astype(jnp.float32)      # [1, 64]
    a_dst = params["a_dst"].astype(jnp.float32)      # [1, 64]
    in_dim, gat_out = w_fc.shape
    ll_out = params["w_ll"].shape[1]

    # Fold attention vectors into the projection matmul.
    w_aug = jnp.zeros((in_dim, lane), jnp.float32)
    w_aug = w_aug.at[:, :gat_out].set(w_fc)
    w_aug = w_aug.at[:, gat_out:gat_out + 1].set(w_fc @ a_src.T)
    w_aug = w_aug.at[:, gat_out + 1:gat_out + 2].set(w_fc @ a_dst.T)

    # 128-lane padded head params; padded gamma/beta are ZERO so junk/pad lanes
    # are exactly zeroed by the batch-stat BatchNorms.
    g0 = jnp.zeros((1, lane), jnp.float32).at[:, :gat_out].set(
        params["bn_g"].reshape(1, gat_out).astype(jnp.float32))
    b0 = jnp.zeros((1, lane), jnp.float32).at[:, :gat_out].set(
        params["bn_b"].reshape(1, gat_out).astype(jnp.float32))
    w_ll = jnp.zeros((lane, lane), jnp.float32).at[:gat_out, :ll_out].set(
        params["w_ll"].astype(jnp.float32))
    g1 = jnp.zeros((1, lane), jnp.float32).at[:, :ll_out].set(
        params["bn1_g"].reshape(1, ll_out).astype(jnp.float32))
    b1 = jnp.zeros((1, lane), jnp.float32).at[:, :ll_out].set(
        params["bn1_b"].reshape(1, ll_out).astype(jnp.float32))
    # NOTE: b_ll intentionally unused -- cancelled exactly by batch-stat BN1.

    return {"w_aug": w_aug, "g0": g0, "b0": b0, "w_ll": w_ll, "g1": g1, "b1": b1,
            "gat_out": gat_out, "ll_out": ll_out}


def _vmem_limit_bytes():
    try:
        kind = jax.devices()[0].device_kind.lower()
    except Exception:
        return None
    if "v7" in kind or "7x" in kind:
        return 48 * 1024 * 1024       # v7x: 64 MiB physical per TC -> headroom
    if "v5" in kind or "v6" in kind:
        return 100 * 1024 * 1024      # v5e/v6e: 128 MiB physical
    return None


# -----------------------------------------------------------------------------
# Wrapper: single fused pallas_call, tiled over (dst, src) adjacency tiles.
# -----------------------------------------------------------------------------
def gat_l_forward(h, adj, drug1_idx, fused, *, tile=512):
    n, in_dim = h.shape
    m = int(drug1_idx.shape[0])
    gat_out = fused["gat_out"]
    ll_out = fused["ll_out"]
    lane = LANE

    # Square tiles; lane-dim constraint on adj -> tile is a multiple of 128.
    t = _round_up(max(128, min(tile, _round_up(n, 128))), 128)
    n_pad = _round_up(n, t)
    n_tiles = n_pad // t

    # Zero-pad nodes: padded adj entries are 0 -> no spurious edges (exact).
    h_pad = jnp.zeros((n_pad, in_dim), jnp.float32).at[:n, :].set(
        h.astype(jnp.float32))
    adj_pad = jnp.zeros((n_pad, n_pad), jnp.bfloat16).at[:n, :n].set(
        adj.astype(jnp.bfloat16))            # 0/1 exact in bf16; halves DMA bytes
    idx2 = drug1_idx.reshape(m, 1).astype(jnp.int32)

    grid = (n_tiles, n_tiles)                # (dst, src); src innermost reduction

    grid_spec = pltpu.PrefetchScalarGridSpec(
        num_scalar_prefetch=0,
        grid=grid,
        in_specs=[
            pl.BlockSpec((m, 1), lambda d, s: (0, 0)),            # drug1 indices
            pl.BlockSpec((n_pad, in_dim), lambda d, s: (0, 0)),   # h (resident)
            pl.BlockSpec((in_dim, lane), lambda d, s: (0, 0)),    # W_aug
            pl.BlockSpec((t, t), lambda d, s: (s, d)),            # adj tile [src, dst]
            pl.BlockSpec((1, lane), lambda d, s: (0, 0)),         # bn0 gamma (padded)
            pl.BlockSpec((1, lane), lambda d, s: (0, 0)),         # bn0 beta  (padded)
            pl.BlockSpec((lane, lane), lambda d, s: (0, 0)),      # W_ll (128x128 padded)
            pl.BlockSpec((1, lane), lambda d, s: (0, 0)),         # bn1 gamma (padded)
            pl.BlockSpec((1, lane), lambda d, s: (0, 0)),         # bn1 beta  (padded)
        ],
        out_specs=pl.BlockSpec((m, lane), lambda d, s: (0, 0)),
        scratch_shapes=[
            pltpu.VMEM((n_pad, lane), jnp.float32),   # z_aug (resident)
            pltpu.VMEM((n_pad, 1), jnp.float32),      # s_src
            pltpu.VMEM((n_pad, 1), jnp.float32),      # s_dst
            pltpu.VMEM((n_pad, lane), jnp.float32),   # feat accumulator
        ],
    )

    flops = int(2 * n_pad * in_dim * lane            # projection
                + 2 * n_pad * n_pad * lane           # feat = alpha^T @ z_aug
                + 2 * m * n_pad * lane               # one-hot gather
                + 2 * m * lane * lane)               # head linear
    transcendentals = int(2 * n_pad * n_pad)         # sigmoid (exp + recip)
    bytes_accessed = int(n_pad * n_pad * 2           # adj (bf16) dominant stream
                         + n_pad * in_dim * 4
                         + (in_dim * lane + lane * lane + 4 * lane) * 4
                         + m * (lane * 4 + 4))

    kernel = functools.partial(_gat_l_kernel, gat_out)

    out_pad = pl.pallas_call(
        kernel,
        out_shape=jax.ShapeDtypeStruct((m, lane), jnp.float32),
        grid_spec=grid_spec,
        compiler_params=pltpu.CompilerParams(
            # dst kept "arbitrary": the fused head finalization reads the full
            # feat scratch (cannot be split across v7x's two TensorCores).
            dimension_semantics=("arbitrary", "arbitrary"),
            vmem_limit_bytes=_vmem_limit_bytes(),
        ),
        cost_estimate=pl.CostEstimate(
            flops=flops, transcendentals=transcendentals,
            bytes_accessed=bytes_accessed),
    )(idx2, h_pad, fused["w_aug"], adj_pad,
      fused["g0"], fused["b0"], fused["w_ll"], fused["g1"], fused["b1"])

    return out_pad[:, :ll_out]


# -----------------------------------------------------------------------------
# Pure-JAX reference (same math as the PyTorch module, b_ll included).
# -----------------------------------------------------------------------------
def _reference(h, adj, drug1_idx, p):
    z = h @ p["w_fc"]
    s_src = jnp.sum(z * p["a_src"], axis=-1, keepdims=True)
    s_dst = jnp.sum(z * p["a_dst"], axis=-1, keepdims=True)
    e = s_src + s_dst.T
    e = jnp.where(e >= 0, e, 0.01 * e)
    alpha = jax.nn.sigmoid(e) * adj
    feat = alpha.T @ z
    x = jnp.take(feat, drug1_idx, axis=0)
    eps = 1e-5
    m0 = x.mean(0, keepdims=True); v0 = ((x - m0) ** 2).mean(0, keepdims=True)
    x = (x - m0) / jnp.sqrt(v0 + eps) * p["bn_g"] + p["bn_b"]
    x = jnp.maximum(x, 0.0)
    y = x @ p["w_ll"] + p["b_ll"]            # bias kept; batch-stat BN cancels it
    m1 = y.mean(0, keepdims=True); v1 = ((y - m1) ** 2).mean(0, keepdims=True)
    y = (y - m1) / jnp.sqrt(v1 + eps) * p["bn1_g"] + p["bn1_b"]
    return jnp.maximum(y, 0.0)


def _make_graph(key, n, in_dim):
    h = jax.random.normal(key, (n, in_dim), dtype=jnp.float32)
    # ring edges + self-loops (every node has in-degree >= 1)
    adj_np = np.eye(n, dtype=np.float32)
    for u in range(n):
        adj_np[u, (u + 1) % n] = 1.0
    adj = jnp.asarray(adj_np)
    # first half of the nodes are "drug1" nodes (indices precomputed, jit-safe)
    node_ids = np.array([1] * (n // 2) + [0] * (n - n // 2), dtype=np.int32)
    drug1_idx = jnp.asarray(np.nonzero(node_ids == 1)[0].astype(np.int32))
    return h, adj, drug1_idx


if __name__ == "__main__":
    key = jax.random.PRNGKey(0)
    IN_DIM, GAT_OUT, LL_OUT = 13, 64, 32
    k_g1, k_g2, k_fc, k_attn, k_ll, k_bll = jax.random.split(key, 6)

    # parameters (deterministic init; weights stored as [in, out])
    attn_w = jax.random.normal(k_attn, (1, 2 * GAT_OUT), dtype=jnp.float32) * 0.1
    params = {
        "w_fc": jax.random.normal(k_fc, (IN_DIM, GAT_OUT), dtype=jnp.float32) * 0.1,
        "a_src": attn_w[:, :GAT_OUT],
        "a_dst": attn_w[:, GAT_OUT:],
        "bn_g": jnp.ones((1, GAT_OUT), jnp.float32),
        "bn_b": jnp.zeros((1, GAT_OUT), jnp.float32),
        "w_ll": jax.random.normal(k_ll, (GAT_OUT, LL_OUT), dtype=jnp.float32) * 0.1,
        "b_ll": jax.random.normal(k_bll, (1, LL_OUT), dtype=jnp.float32) * 0.1,
        "bn1_g": jnp.ones((1, LL_OUT), jnp.float32),
        "bn1_b": jnp.zeros((1, LL_OUT), jnp.float32),
    }
    fused = prepare_params(params)

    # --- test 1: module-sized toy graph (N=16, M=8) -> single-tile grid --------
    h1, adj1, idx1 = _make_graph(k_g1, 16, IN_DIM)
    out1 = jax.block_until_ready(gat_l_forward(h1, adj1, idx1, fused, tile=128))
    ref1 = _reference(h1, adj1, idx1, params)
    np.testing.assert_allclose(np.asarray(out1), np.asarray(ref1),
                               rtol=2e-4, atol=2e-4)
    assert out1.shape == (int(idx1.shape[0]), LL_OUT)

    # --- test 2: exercises the tiled path (N=200 -> padded 256, 2x2 grid) ------
    h2, adj2, idx2 = _make_graph(k_g2, 200, IN_DIM)
    out2 = jax.block_until_ready(gat_l_forward(h2, adj2, idx2, fused, tile=128))
    ref2 = _reference(h2, adj2, idx2, params)
    np.testing.assert_allclose(np.asarray(out2), np.asarray(ref2),
                               rtol=2e-4, atol=2e-4)
    assert out2.shape == (int(idx2.shape[0]), LL_OUT)

    print("KERNEL_OK")
</pallas_src>

<mosaic_0001>
module attributes {stable_mosaic.version = 11 : i64} {
  func.func @_gat_l_kernel(%arg0: i32, %arg1: i32, %arg2: memref<8x1xi32, #tpu.memory_space<vmem>>, %arg3: memref<128x13xf32, #tpu.memory_space<vmem>>, %arg4: memref<13x128xf32, #tpu.memory_space<vmem>>, %arg5: memref<128x128xbf16, #tpu.memory_space<vmem>>, %arg6: memref<1x128xf32, #tpu.memory_space<vmem>>, %arg7: memref<1x128xf32, #tpu.memory_space<vmem>>, %arg8: memref<128x128xf32, #tpu.memory_space<vmem>>, %arg9: memref<1x128xf32, #tpu.memory_space<vmem>>, %arg10: memref<1x128xf32, #tpu.memory_space<vmem>>, %arg11: memref<8x128xf32, #tpu.memory_space<vmem>>, %arg12: memref<128x128xf32, #tpu.memory_space<vmem>>, %arg13: memref<128x1xf32, #tpu.memory_space<vmem>>, %arg14: memref<128x1xf32, #tpu.memory_space<vmem>>, %arg15: memref<128x128xf32, #tpu.memory_space<vmem>>) attributes {dimension_semantics = [#tpu.dimension_semantics<arbitrary>, #tpu.dimension_semantics<arbitrary>], iteration_bounds = array<i64: 1, 1>, scalar_prefetch = 0 : i64, scratch_operands = 4 : i64, tpu.core_type = #tpu.core_type<tc>, window_params = [{pipeline_mode = #tpu.pipeline_mode<synchronous>, transform_indices = @transform_0, window_bounds = array<i64: 8, 1>}, {pipeline_mode = #tpu.pipeline_mode<synchronous>, transform_indices = @transform_1, window_bounds = array<i64: 128, 13>}, {pipeline_mode = #tpu.pipeline_mode<synchronous>, transform_indices = @transform_2, window_bounds = array<i64: 13, 128>}, {transform_indices = @transform_3, window_bounds = array<i64: 128, 128>}, {pipeline_mode = #tpu.pipeline_mode<synchronous>, transform_indices = @transform_4, window_bounds = array<i64: 1, 128>}, {pipeline_mode = #tpu.pipeline_mode<synchronous>, transform_indices = @transform_5, window_bounds = array<i64: 1, 128>}, {pipeline_mode = #tpu.pipeline_mode<synchronous>, transform_indices = @transform_6, window_bounds = array<i64: 128, 128>}, {pipeline_mode = #tpu.pipeline_mode<synchronous>, transform_indices = @transform_7, window_bounds = array<i64: 1, 128>}, {pipeline_mode = #tpu.pipeline_mode<synchronous>, transform_indices = @transform_8, window_bounds = array<i64: 1, 128>}, {pipeline_mode = #tpu.pipeline_mode<synchronous>, transform_indices = @transform_9, window_bounds = array<i64: 8, 128>}]} {
    %c0_i32 = arith.constant 0 : i32
    %0 = arith.cmpi eq, %arg0, %c0_i32 : i32
    %c0_i32_0 = arith.constant 0 : i32
    %1 = arith.cmpi eq, %arg1, %c0_i32_0 : i32
    %2 = arith.andi %0, %1 : i1
    %3 = arith.extui %2 : i1 to i32
    %c0_i32_1 = arith.constant 0 : i32
    %4 = arith.cmpi ne, %3, %c0_i32_1 : i32
    scf.if %4 {
      %c0_15 = arith.constant 0 : index
      %c0_16 = arith.constant 0 : index
      %43 = vector.load %arg3[%c0_15, %c0_16] : memref<128x13xf32, #tpu.memory_space<vmem>>, vector<128x13xf32>
      %c0_17 = arith.constant 0 : index
      %c0_18 = arith.constant 0 : index
      %44 = vector.load %arg4[%c0_17, %c0_18] : memref<13x128xf32, #tpu.memory_space<vmem>>, vector<13x128xf32>
      %cst_19 = arith.constant dense<0.000000e+00> : vector<128x128xf32>
      %45 = tpu.matmul %43, %44, %cst_19 {dimension_numbers = #tpu.dot_dimension_numbers<[1], [0], [0], [1], [0, 0, 1, 1], [], []>} : vector<128x13xf32>, vector<13x128xf32>, vector<128x128xf32> -> vector<128x128xf32>
      %c0_20 = arith.constant 0 : index
      %c0_21 = arith.constant 0 : index
      %46 = vector.load %arg12[%c0_20, %c0_21] : memref<128x128xf32, #tpu.memory_space<vmem>>, vector<128x128xf32>
      tpu.vector_store %arg12[%c0_20, %c0_21], %45 {strides = array<i32>} : memref<128x128xf32, #tpu.memory_space<vmem>>, vector<128x128xf32>,
      %47 = vector.extract_strided_slice %45 {offsets = [0, 64], sizes = [128, 1], strides = [1, 1]} : vector<128x128xf32> to vector<128x1xf32>
      %c0_22 = arith.constant 0 : index
      %c0_23 = arith.constant 0 : index
      %48 = vector.load %arg13[%c0_22, %c0_23] : memref<128x1xf32, #tpu.memory_space<vmem>>, vector<128x1xf32>
      tpu.vector_store %arg13[%c0_22, %c0_23], %47 {strides = array<i32>} : memref<128x1xf32, #tpu.memory_space<vmem>>, vector<128x1xf32>,
      %49 = vector.extract_strided_slice %45 {offsets = [0, 65], sizes = [128, 1], strides = [1, 1]} : vector<128x128xf32> to vector<128x1xf32>
      %c0_24 = arith.constant 0 : index
      %c0_25 = arith.constant 0 : index
      %50 = vector.load %arg14[%c0_24, %c0_25] : memref<128x1xf32, #tpu.memory_space<vmem>>, vector<128x1xf32>
      tpu.vector_store %arg14[%c0_24, %c0_25], %49 {strides = array<i32>} : memref<128x1xf32, #tpu.memory_space<vmem>>, vector<128x1xf32>,
      %cst_26 = arith.constant 0.000000e+00 : f32
      %51 = vector.broadcast %cst_26 : f32 to vector<128x128xf32>
      %c0_27 = arith.constant 0 : index
      %c0_28 = arith.constant 0 : index
      %52 = vector.load %arg15[%c0_27, %c0_28] : memref<128x128xf32, #tpu.memory_space<vmem>>, vector<128x128xf32>
      tpu.vector_store %arg15[%c0_27, %c0_28], %51 {strides = array<i32>} : memref<128x128xf32, #tpu.memory_space<vmem>>, vector<128x128xf32>,
    } else {
    }
    %c128_i32 = arith.constant 128 : i32
    %5 = arith.muli %arg1, %c128_i32 : i32
    %6 = tpu.assume_multiple %5, 128 : i32
    %c128_i32_2 = arith.constant 128 : i32
    %7 = arith.muli %arg0, %c128_i32_2 : i32
    %8 = tpu.assume_multiple %7, 128 : i32
    %9 = arith.index_cast %6 : i32 to index
    %c0 = arith.constant 0 : index
    %10 = vector.load %arg13[%9, %c0] : memref<128x1xf32, #tpu.memory_space<vmem>>, vector<128x1xf32>
    %11 = arith.index_cast %8 : i32 to index
    %c0_3 = arith.constant 0 : index
    %12 = vector.load %arg14[%11, %c0_3] : memref<128x1xf32, #tpu.memory_space<vmem>>, vector<128x1xf32>
    %13 = tpu.transpose %12, [1, 0] : vector<128x1xf32> -> vector<1x128xf32>
    %14 = vector.broadcast %10 : vector<128x1xf32> to vector<128x128xf32>
    %15 = vector.broadcast %13 : vector<1x128xf32> to vector<128x128xf32>
    %16 = arith.addf %14, %15 : vector<128x128xf32>
    %cst = arith.constant 0.000000e+00 : f32
    %17 = vector.broadcast %cst : f32 to vector<128x128xf32>
    %18 = arith.cmpf oge, %16, %17 : vector<128x128xf32>
    %cst_4 = arith.constant 0.00999999977 : f32
    %19 = vector.broadcast %cst_4 : f32 to vector<128x128xf32>
    %20 = arith.mulf %19, %16 : vector<128x128xf32>
    %21 = arith.select %18, %16, %20 : vector<128x128xi1>, vector<128x128xf32>
    %22 = arith.negf %21 : vector<128x128xf32>
    %23 = math.exp %22 : vector<128x128xf32>
    %cst_5 = arith.constant 1.000000e+00 : f32
    %24 = vector.broadcast %cst_5 : f32 to vector<128x128xf32>
    %25 = arith.addf %24, %23 : vector<128x128xf32>
    %26 = arith.divf %24, %25 : vector<128x128xf32>
    %c0_6 = arith.constant 0 : index
    %c0_7 = arith.constant 0 : index
    %27 = vector.load %arg5[%c0_6, %c0_7] : memref<128x128xbf16, #tpu.memory_space<vmem>>, vector<128x128xbf16>
    %28 = arith.extf %27 : vector<128x128xbf16> to vector<128x128xf32>
    %29 = arith.mulf %26, %28 : vector<128x128xf32>
    %30 = arith.index_cast %6 : i32 to index
    %c0_8 = arith.constant 0 : index
    %31 = vector.load %arg12[%30, %c0_8] : memref<128x128xf32, #tpu.memory_space<vmem>>, vector<128x128xf32>
    %cst_9 = arith.constant dense<0.000000e+00> : vector<128x128xf32>
    %32 = tpu.matmul %29, %31, %cst_9 {dimension_numbers = #tpu.dot_dimension_numbers<[0], [0], [1], [1], [0, 1, 1, 1], [], []>} : vector<128x128xf32>, vector<128x128xf32>, vector<128x128xf32> -> vector<128x128xf32>
    %33 = arith.index_cast %8 : i32 to index
    %c0_10 = arith.constant 0 : index
    %34 = vector.load %arg15[%33, %c0_10] : memref<128x128xf32, #tpu.memory_space<vmem>>, vector<128x128xf32>
    %35 = arith.addf %34, %32 : vector<128x128xf32>
    %36 = arith.index_cast %8 : i32 to index
    %c0_11 = arith.constant 0 : index
    %37 = vector.load %arg15[%36, %c0_11] : memref<128x128xf32, #tpu.memory_space<vmem>>, vector<128x128xf32>
    tpu.vector_store %arg15[%36, %c0_11], %35 {strides = array<i32>} : memref<128x128xf32, #tpu.memory_space<vmem>>, vector<128x128xf32>,
    %c0_i32_12 = arith.constant 0 : i32
    %38 = arith.cmpi eq, %arg0, %c0_i32_12 : i32
    %c0_i32_13 = arith.constant 0 : i32
    %39 = arith.cmpi eq, %arg1, %c0_i32_13 : i32
    %40 = arith.andi %38, %39 : i1
    %41 = arith.extui %40 : i1 to i32
    %c0_i32_14 = arith.constant 0 : i32
    %42 = arith.cmpi ne, %41, %c0_i32_14 : i32
    scf.if %42 {
      %43 = tpu.iota {dimensions = array<i32: 1>} : vector<8x128xi32>
      %c0_15 = arith.constant 0 : index
      %c0_16 = arith.constant 0 : index
      %44 = vector.load %arg2[%c0_15, %c0_16] : memref<8x1xi32, #tpu.memory_space<vmem>>, vector<8x1xi32>
      %45 = vector.broadcast %44 : vector<8x1xi32> to vector<8x128xi32>
      %46 = arith.cmpi eq, %43, %45 : vector<8x128xi32>
      %47 = arith.extui %46 : vector<8x128xi1> to vector<8x128xi32>
      %48 = arith.sitofp %47 : vector<8x128xi32> to vector<8x128xf32>
      %c0_17 = arith.constant 0 : index
      %c0_18 = arith.constant 0 : index
      %49 = vector.load %arg15[%c0_17, %c0_18] : memref<128x128xf32, #tpu.memory_space<vmem>>, vector<128x128xf32>
      %cst_19 = arith.constant dense<0.000000e+00> : vector<8x128xf32>
      %50 = tpu.matmul %48, %49, %cst_19 {dimension_numbers = #tpu.dot_dimension_numbers<[1], [0], [0], [1], [0, 0, 1, 1], [], []>} : vector<8x128xf32>, vector<128x128xf32>, vector<8x128xf32> -> vector<8x128xf32>
      %cst_20 = arith.constant dense<0.000000e+00> : vector<128xf32>
      %51 = vector.multi_reduction <add>, %50, %cst_20 [0] : vector<8x128xf32> to vector<128xf32>
      %52 = vector.shape_cast %51 : vector<128xf32> to vector<1x128xf32>
      %cst_21 = arith.constant 8.000000e+00 : f32
      %53 = vector.broadcast %cst_21 : f32 to vector<1x128xf32>
      %54 = arith.divf %52, %53 : vector<1x128xf32>
      %55 = vector.broadcast %54 : vector<1x128xf32> to vector<8x128xf32>
      %56 = arith.subf %50, %55 : vector<8x128xf32>
      %57 = arith.mulf %56, %56 : vector<8x128xf32>
      %cst_22 = arith.constant dense<0.000000e+00> : vector<128xf32>
      %58 = vector.multi_reduction <add>, %57, %cst_22 [0] : vector<8x128xf32> to vector<128xf32>
      %59 = vector.shape_cast %58 : vector<128xf32> to vector<1x128xf32>
      %cst_23 = arith.constant 8.000000e+00 : f32
      %60 = vector.broadcast %cst_23 : f32 to vector<1x128xf32>
      %61 = arith.divf %59, %60 : vector<1x128xf32>
      %62 = vector.broadcast %54 : vector<1x128xf32> to vector<8x128xf32>
      %63 = arith.subf %50, %62 : vector<8x128xf32>
      %cst_24 = arith.constant 9.99999974E-6 : f32
      %64 = vector.broadcast %cst_24 : f32 to vector<1x128xf32>
      %65 = arith.addf %61, %64 : vector<1x128xf32>
      %66 = math.rsqrt %65 : vector<1x128xf32>
      %67 = vector.broadcast %66 : vector<1x128xf32> to vector<8x128xf32>
      %68 = arith.mulf %63, %67 : vector<8x128xf32>
      %c0_25 = arith.constant 0 : index
      %c0_26 = arith.constant 0 : index
      %69 = vector.load %arg6[%c0_25, %c0_26] : memref<1x128xf32, #tpu.memory_space<vmem>>, vector<1x128xf32>
      %70 = vector.broadcast %69 : vector<1x128xf32> to vector<8x128xf32>
      %71 = arith.mulf %68, %70 : vector<8x128xf32>
      %c0_27 = arith.constant 0 : index
      %c0_28 = arith.constant 0 : index
      %72 = vector.load %arg7[%c0_27, %c0_28] : memref<1x128xf32, #tpu.memory_space<vmem>>, vector<1x128xf32>
      %73 = vector.broadcast %72 : vector<1x128xf32> to vector<8x128xf32>
      %74 = arith.addf %71, %73 : vector<8x128xf32>
      %cst_29 = arith.constant 0.000000e+00 : f32
      %75 = vector.broadcast %cst_29 : f32 to vector<8x128xf32>
      %76 = arith.maximumf %74, %75 : vector<8x128xf32>
      %c0_30 = arith.constant 0 : index
      %c0_31 = arith.constant 0 : index
      %77 = vector.load %arg8[%c0_30, %c0_31] : memref<128x128xf32, #tpu.memory_space<vmem>>, vector<128x128xf32>
      %cst_32 = arith.constant dense<0.000000e+00> : vector<8x128xf32>
      %78 = tpu.matmul %76, %77, %cst_32 {dimension_numbers = #tpu.dot_dimension_numbers<[1], [0], [0], [1], [0, 0, 1, 1], [], []>} : vector<8x128xf32>, vector<128x128xf32>, vector<8x128xf32> -> vector<8x128xf32>
      %cst_33 = arith.constant dense<0.000000e+00> : vector<128xf32>
      %79 = vector.multi_reduction <add>, %78, %cst_33 [0] : vector<8x128xf32> to vector<128xf32>
      %80 = vector.shape_cast %79 : vector<128xf32> to vector<1x128xf32>
      %cst_34 = arith.constant 8.000000e+00 : f32
      %81 = vector.broadcast %cst_34 : f32 to vector<1x128xf32>
      %82 = arith.divf %80, %81 : vector<1x128xf32>
      %83 = vector.broadcast %82 : vector<1x128xf32> to vector<8x128xf32>
      %84 = arith.subf %78, %83 : vector<8x128xf32>
      %85 = arith.mulf %84, %84 : vector<8x128xf32>
      %cst_35 = arith.constant dense<0.000000e+00> : vector<128xf32>
      %86 = vector.multi_reduction <add>, %85, %cst_35 [0] : vector<8x128xf32> to vector<128xf32>
      %87 = vector.shape_cast %86 : vector<128xf32> to vector<1x128xf32>
      %cst_36 = arith.constant 8.000000e+00 : f32
      %88 = vector.broadcast %cst_36 : f32 to vector<1x128xf32>
      %89 = arith.divf %87, %88 : vector<1x128xf32>
      %90 = vector.broadcast %82 : vector<1x128xf32> to vector<8x128xf32>
      %91 = arith.subf %78, %90 : vector<8x128xf32>
      %cst_37 = arith.constant 9.99999974E-6 : f32
      %92 = vector.broadcast %cst_37 : f32 to vector<1x128xf32>
      %93 = arith.addf %89, %92 : vector<1x128xf32>
      %94 = math.rsqrt %93 : vector<1x128xf32>
      %95 = vector.broadcast %94 : vector<1x128xf32> to vector<8x128xf32>
      %96 = arith.mulf %91, %95 : vector<8x128xf32>
      %c0_38 = arith.constant 0 : index
      %c0_39 = arith.constant 0 : index
      %97 = vector.load %arg9[%c0_38, %c0_39] : memref<1x128xf32, #tpu.memory_space<vmem>>, vector<1x128xf32>
      %98 = vector.broadcast %97 : vector<1x128xf32> to vector<8x128xf32>
      %99 = arith.mulf %96, %98 : vector<8x128xf32>
      %c0_40 = arith.constant 0 : index
      %c0_41 = arith.constant 0 : index
      %100 = vector.load %arg10[%c0_40, %c0_41] : memref<1x128xf32, #tpu.memory_space<vmem>>, vector<1x128xf32>
      %101 = vector.broadcast %100 : vector<1x128xf32> to vector<8x128xf32>
      %102 = arith.addf %99, %101 : vector<8x128xf32>
      %cst_42 = arith.constant 0.000000e+00 : f32
      %103 = vector.broadcast %cst_42 : f32 to vector<8x128xf32>
      %104 = arith.maximumf %102, %103 : vector<8x128xf32>
      %c0_43 = arith.constant 0 : index
      %c0_44 = arith.constant 0 : index
      %105 = vector.load %arg11[%c0_43, %c0_44] : memref<8x128xf32, #tpu.memory_space<vmem>>, vector<8x128xf32>
      tpu.vector_store %arg11[%c0_43, %c0_44], %104 {strides = array<i32>} : memref<8x128xf32, #tpu.memory_space<vmem>>, vector<8x128xf32>,
    } else {
    }
    return
  }
  func.func @transform_0(%arg0: i32, %arg1: i32) -> (i32, i32) {
    %c0_i32 = arith.constant 0 : i32
    %c0_i32_0 = arith.constant 0 : i32
    %c0_i32_1 = arith.constant 0 : i32
    return %c0_i32, %c0_i32_0 : i32, i32
  }
  func.func @transform_1(%arg0: i32, %arg1: i32) -> (i32, i32) {
    %c0_i32 = arith.constant 0 : i32
    %c0_i32_0 = arith.constant 0 : i32
    %c0_i32_1 = arith.constant 0 : i32
    return %c0_i32, %c0_i32_0 : i32, i32
  }
  func.func @transform_2(%arg0: i32, %arg1: i32) -> (i32, i32) {
    %c0_i32 = arith.constant 0 : i32
    %c0_i32_0 = arith.constant 0 : i32
    %c0_i32_1 = arith.constant 0 : i32
    return %c0_i32, %c0_i32_0 : i32, i32
  }
  func.func @transform_3(%arg0: i32, %arg1: i32) -> (i32, i32) {
    %c0_i32 = arith.constant 0 : i32
    return %arg1, %arg0 : i32, i32
  }
  func.func @transform_4(%arg0: i32, %arg1: i32) -> (i32, i32) {
    %c0_i32 = arith.constant 0 : i32
    %c0_i32_0 = arith.constant 0 : i32
    %c0_i32_1 = arith.constant 0 : i32
    return %c0_i32, %c0_i32_0 : i32, i32
  }
  func.func @transform_5(%arg0: i32, %arg1: i32) -> (i32, i32) {
    %c0_i32 = arith.constant 0 : i32
    %c0_i32_0 = arith.constant 0 : i32
    %c0_i32_1 = arith.constant 0 : i32
    return %c0_i32, %c0_i32_0 : i32, i32
  }
  func.func @transform_6(%arg0: i32, %arg1: i32) -> (i32, i32) {
    %c0_i32 = arith.constant 0 : i32
    %c0_i32_0 = arith.constant 0 : i32
    %c0_i32_1 = arith.constant 0 : i32
    return %c0_i32, %c0_i32_0 : i32, i32
  }
  func.func @transform_7(%arg0: i32, %arg1: i32) -> (i32, i32) {
    %c0_i32 = arith.constant 0 : i32
    %c0_i32_0 = arith.constant 0 : i32
    %c0_i32_1 = arith.constant 0 : i32
    return %c0_i32, %c0_i32_0 : i32, i32
  }
  func.func @transform_8(%arg0: i32, %arg1: i32) -> (i32, i32) {
    %c0_i32 = arith.constant 0 : i32
    %c0_i32_0 = arith.constant 0 : i32
    %c0_i32_1 = arith.constant 0 : i32
    return %c0_i32, %c0_i32_0 : i32, i32
  }
  func.func @transform_9(%arg0: i32, %arg1: i32) -> (i32, i32) {
    %c0_i32 = arith.constant 0 : i32
    %c0_i32_0 = arith.constant 0 : i32
    %c0_i32_1 = arith.constant 0 : i32
    return %c0_i32, %c0_i32_0 : i32, i32
  }
}

</mosaic_0001>

<llo_original>
// kernel: tpu_custom_call.1
$region0: #{tpu_custom_call.1}
  #allocation0 [shape = 'u32[]', space=smem, size = 0x4, offset = 0x4, fixed_abs, tag = 'smem constant byte address 0x4 - core index']
  #allocation1 [shape = 'u32[144,128]{1,0:T(1,128)}', space=vmem, size = 0x12000, scoped, tag = 'internal scratch']
  #allocation2 [shape = 'f32[128,128]{1,0:T(8,128)}', space=vmem, size = 0x10000, scoped, tag = 'scratch operand']
  #allocation3 [shape = 'f32[128,1]{1,0:T(8,128)}', space=vmem, size = 0x10000, scoped, tag = 'scratch operand']
  #allocation4 [shape = 'f32[128,1]{1,0:T(8,128)}', space=vmem, size = 0x10000, scoped, tag = 'scratch operand']
  #allocation5 [shape = 'f32[128,128]{1,0:T(8,128)}', space=vmem, size = 0x10000, scoped, tag = 'scratch operand']
  %s0 = inlined_call_operand.vmem [shape: s32[8,1], index: 0, kind: input, shape index: {}]
  %s1 = inlined_call_operand.vmem [shape: f32[128,13], index: 1, kind: input, shape index: {}]
  %s2 = inlined_call_operand.vmem [shape: f32[13,128], index: 2, kind: input, shape index: {}]
  %s3 = inlined_call_operand.hbm [shape: bf16[128,128], index: 3, kind: input, shape index: {}]
  %s4 = inlined_call_operand.vmem [shape: f32[1,128], index: 4, kind: input, shape index: {}]
  %s5 = inlined_call_operand.vmem [shape: f32[1,128], index: 5, kind: input, shape index: {}]
  %s6 = inlined_call_operand.vmem [shape: f32[128,128], index: 6, kind: input, shape index: {}]
  %s7 = inlined_call_operand.vmem [shape: f32[1,128], index: 7, kind: input, shape index: {}]
  %s8 = inlined_call_operand.vmem [shape: f32[1,128], index: 8, kind: input, shape index: {}]
  %s9 = inlined_call_operand.hbm [shape: f32[8,128], index: 9, kind: output, shape index: {}]
  %s10 = sld [smem:[#allocation0]]
  $region58: #{tpu_custom_call.1} parent=0
    _
  %s12 = ssub.s32 1, %s10
  %s13 = scalar_select 0, %s12, %s10
  $region1: #{tpu_custom_call.1} parent=0
    #allocation6 [shape = 'u8[32768]{0}', space=vmem, size = 0x8000, scoped, tag = 'input window, operand 3, single buffered']
    #allocation7 [shape = 's32[1]{0}', space=sflag, size = 0x4, scoped, tag = 'scoped memory for tpu_custom_call.1']
    #allocation8 [shape = 's32[1]{0}', space=sflag, size = 0x4, scoped, tag = 'scoped memory for tpu_custom_call.1']
    #allocation9 [shape = 'u8[4096]{0}', space=vmem, size = 0x1000, scoped, tag = 'output window, operand 0, single buffered']
    %14 = vsyncpa [#allocation7], 0
    %15 = vsyncpa [#allocation8], 0
    // Predicated region
    $region2: #{tpu_custom_call.1} parent=1 // pred_check
      _
    $region3: #{tpu_custom_call.1} parent=1 // pred_check_branch
      %17 = sbr.rel (0) target = $region5
    $region4: #{tpu_custom_call.1} parent=1 // pred_region
      _
    $region5: #{tpu_custom_call.1} parent=1 // pred_fallthru
      _
    // Predicated region
    $region6: #{tpu_custom_call.1} parent=1 // pred_check
      _
    $region7: #{tpu_custom_call.1} parent=1 // pred_check_branch
      %19 = sbr.rel (0) target = $region9
    $region8: #{tpu_custom_call.1} parent=1 // pred_region
      _
    $region9: #{tpu_custom_call.1} parent=1 // pred_fallthru
      _
    // Predicated region
    $region10: #{tpu_custom_call.1} parent=1 // pred_check
      _
    $region11: #{tpu_custom_call.1} parent=1 // pred_check_branch
      %21 = sbr.rel (0) target = $region13
    $region12: #{tpu_custom_call.1} parent=1 // pred_region
      _
    $region13: #{tpu_custom_call.1} parent=1 // pred_fallthru
      _
    // Predicated region
    $region14: #{tpu_custom_call.1} parent=1 // pred_check
      _
    $region15: #{tpu_custom_call.1} parent=1 // pred_check_branch
      %23 = sbr.rel (0) target = $region17
    $region16: #{tpu_custom_call.1} parent=1 // pred_region
      %s25 = ssub.s32 1024, 1024
      %26 = vsyncadd [#allocation7], %s25
      %s27 = sshll.u32 [#allocation6], 4
      %s28 = int_to_ptr.vmem [resolvable:$true] %s27
      %33 = dma.hbm_to_vmem [thread:$0]  %s3, 1024, %s28, [#allocation7], 64, 64, 4
    $region17: #{tpu_custom_call.1} parent=1 // pred_fallthru
      _
    // Predicated region
    $region18: #{tpu_custom_call.1} parent=1 // pred_check
      _
    $region19: #{tpu_custom_call.1} parent=1 // pred_check_branch
      %35 = sbr.rel (0) target = $region21
    $region20: #{tpu_custom_call.1} parent=1 // pred_region
      _
    $region21: #{tpu_custom_call.1} parent=1 // pred_fallthru
      _
    // Predicated region
    $region22: #{tpu_custom_call.1} parent=1 // pred_check
      _
    $region23: #{tpu_custom_call.1} parent=1 // pred_check_branch
      %37 = sbr.rel (0) target = $region25
    $region24: #{tpu_custom_call.1} parent=1 // pred_region
      _
    $region25: #{tpu_custom_call.1} parent=1 // pred_fallthru
      _
    // Predicated region
    $region26: #{tpu_custom_call.1} parent=1 // pred_check
      _
    $region27: #{tpu_custom_call.1} parent=1 // pred_check_branch
      %39 = sbr.rel (0) target = $region29
    $region28: #{tpu_custom_call.1} parent=1 // pred_region
      _
    $region29: #{tpu_custom_call.1} parent=1 // pred_fallthru
      _
    // Predicated region
    $region30: #{tpu_custom_call.1} parent=1 // pred_check
      _
    $region31: #{tpu_custom_call.1} parent=1 // pred_check_branch
      %41 = sbr.rel (0) target = $region33
    $region32: #{tpu_custom_call.1} parent=1 // pred_region
      _
    $region33: #{tpu_custom_call.1} parent=1 // pred_fallthru
      _
    // Predicated region
    $region34: #{tpu_custom_call.1} parent=1 // pred_check
      _
    $region35: #{tpu_custom_call.1} parent=1 // pred_check_branch
      %43 = sbr.rel (0) target = $region37
    $region36: #{tpu_custom_call.1} parent=1 // pred_region
      _
    $region37: #{tpu_custom_call.1} parent=1 // pred_fallthru
      _
    // Predicated region
    $region38: #{tpu_custom_call.1} parent=1 // pred_check
      _
    $region39: #{tpu_custom_call.1} parent=1 // pred_check_branch
      %45 = sbr.rel (0) target = $region41
    $region40: #{tpu_custom_call.1} parent=1 // pred_region
      %46 = dma.done [#allocation7], 1024
    $region41: #{tpu_custom_call.1} parent=1 // pred_fallthru
      _
    %p47 = scmp.eq.s32.totalorder 0, 0
    %p48 = scmp.eq.s32.totalorder 0, 0
    %p49 = pnand %p47, %p48
    %p50 = pneg %p49
    // Predicated region
    $region42: #{tpu_custom_call.1} parent=1 // pred_check
      _
    $region43: #{tpu_custom_call.1} parent=1 // pred_check_branch
      %52 = sbr.rel (%p49) target = $region45
    $region44: #{tpu_custom_call.1} parent=1 // pred_region
      %v53 = vld [vmem:[%s1] sm:$0xff]
      %v54 = vld [vmem:[%s1 + $0x8] sm:$0xff]
      %v55 = vld [vmem:[%s1 + $0x10] sm:$0xff]
      %v56 = vld [vmem:[%s1 + $0x18] sm:$0xff]
      %v57 = vld [vmem:[%s1 + $0x20] sm:$0xff]
      %v58 = vld [vmem:[%s1 + $0x28] sm:$0xff]
      %v59 = vld [vmem:[%s1 + $0x30] sm:$0xff]
      %v60 = vld [vmem:[%s1 + $0x38] sm:$0xff]
      %v61 = vld [vmem:[%s1 + $0x40] sm:$0xff]
      %v62 = vld [vmem:[%s1 + $0x48] sm:$0xff]
      %v63 = vld [vmem:[%s1 + $0x50] sm:$0xff]
      %v64 = vld [vmem:[%s1 + $0x58] sm:$0xff]
      %v65 = vld [vmem:[%s1 + $0x60] sm:$0xff]
      %v66 = vld [vmem:[%s1 + $0x68] sm:$0xff]
      %v67 = vld [vmem:[%s1 + $0x70] sm:$0xff]
      %v68 = vld [vmem:[%s1 + $0x78] sm:$0xff]
      %v69 = vld [vmem:[%s2] sm:$0xff]
      %v70 = vld [vmem:[%s2 + $0x8] sm:$0x1f]
      %vm71 = vcmask 105472
      %v73 = vsel %vm71, %v53, 0
      %v76 = vsel %vm71, %v54, 0
      %v79 = vsel %vm71, %v55, 0
      %v82 = vsel %vm71, %v56, 0
      %v85 = vsel %vm71, %v57, 0
      %v88 = vsel %vm71, %v58, 0
      %v91 = vsel %vm71, %v59, 0
      %v94 = vsel %vm71, %v60, 0
      %v97 = vsel %vm71, %v61, 0
      %v100 = vsel %vm71, %v62, 0
      %v103 = vsel %vm71, %v63, 0
      %v106 = vsel %vm71, %v64, 0
      %v109 = vsel %vm71, %v65, 0
      %v112 = vsel %vm71, %v66, 0
      %v115 = vsel %vm71, %v67, 0
      %v118 = vsel %vm71, %v68, 0
      %vm120 = vcmask 1044480
      %v122 = vsel %vm120, %v70, 0
      %124 = vmatprep.subr.mxu0 0.0
      %125 = vmatpush1.msra.mxu0 %v69
      %126 = vmatprep.subr.mxu0 0.0
      %127 = vmatpush1.msra.mxu0 %v122
      %128 = vmatprep.subr.mxu0 0.0
      %129 = vmatpush1.msra.mxu0 0.0
      %130 = vmatprep.subr.mxu0 0.0
      %131 = vmatpush1.msra.mxu0 0.0
      %132 = vmatprep.subr.mxu0 0.0
      %133 = vmatpush1.msra.mxu0 0.0
      %134 = vmatprep.subr.mxu0 0.0
      %135 = vmatpush1.msra.mxu0 0.0
      %136 = vmatprep.subr.mxu0 0.0
      %137 = vmatpush1.msra.mxu0 0.0
      %138 = vmatprep.subr.mxu0 0.0
      %139 = vmatpush1.msra.mxu0 0.0
      %140 = vmatprep.subr.mxu0 0.0
      %141 = vmatpush1.msra.mxu0 0.0
      %142 = vmatprep.subr.mxu0 0.0
      %143 = vmatpush1.msra.mxu0 0.0
      %144 = vmatprep.subr.mxu0 0.0
      %145 = vmatpush1.msra.mxu0 0.0
      %146 = vmatprep.subr.mxu0 0.0
      %147 = vmatpush1.msra.mxu0 0.0
      %148 = vmatprep.subr.mxu0 0.0
      %149 = vmatpush1.msra.mxu0 0.0
      %150 = vmatprep.subr.mxu0 0.0
      %151 = vmatpush1.msra.mxu0 0.0
      %152 = vmatprep.subr.mxu0 0.0
      %153 = vmatpush1.msra.mxu0 0.0
      %154 = vmatprep.subr.mxu0 0.0
      %155 = vmatpush1.msra.mxu0 0.0
      %156 = vmatprep.subr.mxu0 0.0
      %157 = vmatpush1.msra.mxu0 0.0
      %158 = vmatprep.subr.mxu0 0.0
      %159 = vmatpush1.msra.mxu0 0.0
      %160 = vmatprep.subr.mxu0 0.0
      %161 = vmatpush1.msra.mxu0 0.0
      %162 = vmatprep.subr.mxu0 0.0
      %163 = vmatpush1.msra.mxu0 0.0
      %164 = vmatprep.subr.mxu0 0.0
      %165 = vmatpush1.msra.mxu0 0.0
      %166 = vmatprep.subr.mxu0 0.0
      %167 = vmatpush1.msra.mxu0 0.0
      %168 = vmatprep.subr.mxu0 0.0
      %169 = vmatpush1.msra.mxu0 0.0
      %170 = vmatprep.subr.mxu0 0.0
      %171 = vmatpush1.msra.mxu0 0.0
      %172 = vmatprep.subr.mxu0 0.0
      %173 = vmatpush1.msra.mxu0 0.0
      %174 = vmatprep.subr.mxu0 0.0
      %175 = vmatpush1.msra.mxu0 0.0
      %176 = vmatprep.subr.mxu0 0.0
      %177 = vmatpush1.msra.mxu0 0.0
      %178 = vmatprep.subr.mxu0 0.0
      %179 = vmatpush1.msra.mxu0 0.0
      %180 = vmatprep.subr.mxu0 0.0
      %181 = vmatpush1.msra.mxu0 0.0
      %182 = vmatprep.subr.mxu0 0.0
      %183 = vmatpush1.msra.mxu0 0.0
      %184 = vmatprep.subr.mxu0 0.0
      %185 = vmatpush1.msra.mxu0 0.0
      %186 = vmatprep.subr.mxu0 0.0
      %187 = vmatpush1.msra.mxu0 0.0
      %188 = vmatprep.mubr.f32.mxu0 0.0
      %189 = vmatmul.mubr.f32.gmra.mrb[0].mxu0 %v73
      %v190 = vpop.f32.mrb[0].mxu0
      %v191 = vadd.f32 0.0, %v190
      %v192 = vpop.f32.mrb[0].mxu0
      %193 = vmatprep.mubr.f32.mxu0 0.0
      %194 = vmatmul.mubr.f32.gmra.mrb[0].mxu0 %v76
      %v195 = vpop.f32.mrb[0].mxu0
      %v196 = vadd.f32 0.0, %v195
      %v197 = vpop.f32.mrb[0].mxu0
      %198 = vmatprep.mubr.f32.mxu0 0.0
      %199 = vmatmul.mubr.f32.gmra.mrb[0].mxu0 %v79
      %v200 = vpop.f32.mrb[0].mxu0
      %v201 = vadd.f32 0.0, %v200
      %v202 = vpop.f32.mrb[0].mxu0
      %203 = vmatprep.mubr.f32.mxu0 0.0
      %204 = vmatmul.mubr.f32.gmra.mrb[0].mxu0 %v82
      %v205 = vpop.f32.mrb[0].mxu0
      %v206 = vadd.f32 0.0, %v205
      %v207 = vpop.f32.mrb[0].mxu0
      %208 = vmatprep.mubr.f32.mxu0 0.0
      %209 = vmatmul.mubr.f32.gmra.mrb[0].mxu0 %v85
      %v210 = vpop.f32.mrb[0].mxu0
      %v211 = vadd.f32 0.0, %v210
      %v212 = vpop.f32.mrb[0].mxu0
      %213 = vmatprep.mubr.f32.mxu0 0.0
      %214 = vmatmul.mubr.f32.gmra.mrb[0].mxu0 %v88
      %v215 = vpop.f32.mrb[0].mxu0
      %v216 = vadd.f32 0.0, %v215
      %v217 = vpop.f32.mrb[0].mxu0
      %218 = vmatprep.mubr.f32.mxu0 0.0
      %219 = vmatmul.mubr.f32.gmra.mrb[0].mxu0 %v91
      %v220 = vpop.f32.mrb[0].mxu0
      %v221 = vadd.f32 0.0, %v220
      %v222 = vpop.f32.mrb[0].mxu0
      %223 = vmatprep.mubr.f32.mxu0 0.0
      %224 = vmatmul.mubr.f32.gmra.mrb[0].mxu0 %v94
      %v225 = vpop.f32.mrb[0].mxu0
      %v226 = vadd.f32 0.0, %v225
      %v227 = vpop.f32.mrb[0].mxu0
      %228 = vmatprep.mubr.f32.mxu0 0.0
      %229 = vmatmul.mubr.f32.gmra.mrb[0].mxu0 %v97
      %v230 = vpop.f32.mrb[0].mxu0
      %v231 = vadd.f32 0.0, %v230
      %v232 = vpop.f32.mrb[0].mxu0
      %233 = vmatprep.mubr.f32.mxu0 0.0
      %234 = vmatmul.mubr.f32.gmra.mrb[0].mxu0 %v100
      %v235 = vpop.f32.mrb[0].mxu0
      %v236 = vadd.f32 0.0, %v235
      %v237 = vpop.f32.mrb[0].mxu0
      %238 = vmatprep.mubr.f32.mxu0 0.0
      %239 = vmatmul.mubr.f32.gmra.mrb[0].mxu0 %v103
      %v240 = vpop.f32.mrb[0].mxu0
      %v241 = vadd.f32 0.0, %v240
      %v242 = vpop.f32.mrb[0].mxu0
      %243 = vmatprep.mubr.f32.mxu0 0.0
      %244 = vmatmul.mubr.f32.gmra.mrb[0].mxu0 %v106
      %v245 = vpop.f32.mrb[0].mxu0
      %v246 = vadd.f32 0.0, %v245
      %v247 = vpop.f32.mrb[0].mxu0
      %248 = vmatprep.mubr.f32.mxu0 0.0
      %249 = vmatmul.mubr.f32.gmra.mrb[0].mxu0 %v109
      %v250 = vpop.f32.mrb[0].mxu0
      %v251 = vadd.f32 0.0, %v250
      %v252 = vpop.f32.mrb[0].mxu0
      %253 = vmatprep.mubr.f32.mxu0 0.0
      %254 = vmatmul.mubr.f32.gmra.mrb[0].mxu0 %v112
      %v255 = vpop.f32.mrb[0].mxu0
      %v256 = vadd.f32 0.0, %v255
      %v257 = vpop.f32.mrb[0].mxu0
      %258 = vmatprep.mubr.f32.mxu0 0.0
      %259 = vmatmul.mubr.f32.gmra.mrb[0].mxu0 %v115
      %v260 = vpop.f32.mrb[0].mxu0
      %v261 = vadd.f32 0.0, %v260
      %v262 = vpop.f32.mrb[0].mxu0
      %263 = vmatprep.mubr.f32.mxu0 0.0
      %264 = vmatmul.mubr.f32.gmra.mrb[0].mxu0 %v118
      %v265 = vpop.f32.mrb[0].mxu0
      %v266 = vadd.f32 0.0, %v265
      %v267 = vpop.f32.mrb[0].mxu0
      %268 = vdwg.mxu0
      %269 = vst [vmem:[#allocation2] sm:$0xff] %v191
      %270 = vst [vmem:[#allocation2 + $0x8] sm:$0xff] %v196
      %271 = vst [vmem:[#allocation2 + $0x10] sm:$0xff] %v201
      %272 = vst [vmem:[#allocation2 + $0x18] sm:$0xff] %v206
      %273 = vst [vmem:[#allocation2 + $0x20] sm:$0xff] %v211
      %274 = vst [vmem:[#allocation2 + $0x28] sm:$0xff] %v216
      %275 = vst [vmem:[#allocation2 + $0x30] sm:$0xff] %v221
      %276 = vst [vmem:[#allocation2 + $0x38] sm:$0xff] %v226
      %277 = vst [vmem:[#allocation2 + $0x40] sm:$0xff] %v231
      %278 = vst [vmem:[#allocation2 + $0x48] sm:$0xff] %v236
      %279 = vst [vmem:[#allocation2 + $0x50] sm:$0xff] %v241
      %280 = vst [vmem:[#allocation2 + $0x58] sm:$0xff] %v246
      %281 = vst [vmem:[#allocation2 + $0x60] sm:$0xff] %v251
      %282 = vst [vmem:[#allocation2 + $0x68] sm:$0xff] %v256
      %283 = vst [vmem:[#allocation2 + $0x70] sm:$0xff] %v261
      %284 = vst [vmem:[#allocation2 + $0x78] sm:$0xff] %v266
      %301 = vrot.lane.b32.xlu0 %v191, 64
      %v302 = vpop.permute.xlu0 %301
      %303 = vrot.lane.b32.xlu0 %v196, 64
      %v304 = vpop.permute.xlu0 %303
      %305 = vrot.lane.b32.xlu0 %v201, 64
      %v306 = vpop.permute.xlu0 %305
      %307 = vrot.lane.b32.xlu0 %v206, 64
      %v308 = vpop.permute.xlu0 %307
      %309 = vrot.lane.b32.xlu0 %v211, 64
      %v310 = vpop.permute.xlu0 %309
      %311 = vrot.lane.b32.xlu0 %v216, 64
      %v312 = vpop.permute.xlu0 %311
      %313 = vrot.lane.b32.xlu0 %v221, 64
      %v314 = vpop.permute.xlu0 %313
      %315 = vrot.lane.b32.xlu0 %v226, 64
      %v316 = vpop.permute.xlu0 %315
      %317 = vrot.lane.b32.xlu0 %v231, 64
      %v318 = vpop.permute.xlu0 %317
      %319 = vrot.lane.b32.xlu0 %v236, 64
      %v320 = vpop.permute.xlu0 %319
      %321 = vrot.lane.b32.xlu0 %v241, 64
      %v322 = vpop.permute.xlu0 %321
      %323 = vrot.lane.b32.xlu0 %v246, 64
      %v324 = vpop.permute.xlu0 %323
      %325 = vrot.lane.b32.xlu0 %v251, 64
      %v326 = vpop.permute.xlu0 %325
      %327 = vrot.lane.b32.xlu0 %v256, 64
      %v328 = vpop.permute.xlu0 %327
      %329 = vrot.lane.b32.xlu0 %v261, 64
      %v330 = vpop.permute.xlu0 %329
      %331 = vrot.lane.b32.xlu0 %v266, 64
      %v332 = vpop.permute.xlu0 %331
      %vm349 = vcmask 7168
      %350 = vst.msk [vmem:[#allocation3] sm:$0xff] %vm349, %v302
      %351 = vst.msk [vmem:[#allocation3 + $0x8] sm:$0xff] %vm349, %v304
      %352 = vst.msk [vmem:[#allocation3 + $0x10] sm:$0xff] %vm349, %v306
      %353 = vst.msk [vmem:[#allocation3 + $0x18] sm:$0xff] %vm349, %v308
      %354 = vst.msk [vmem:[#allocation3 + $0x20] sm:$0xff] %vm349, %v310
      %355 = vst.msk [vmem:[#allocation3 + $0x28] sm:$0xff] %vm349, %v312
      %356 = vst.msk [vmem:[#allocation3 + $0x30] sm:$0xff] %vm349, %v314
      %357 = vst.msk [vmem:[#allocation3 + $0x38] sm:$0xff] %vm349, %v316
      %358 = vst.msk [vmem:[#allocation3 + $0x40] sm:$0xff] %vm349, %v318
      %359 = vst.msk [vmem:[#allocation3 + $0x48] sm:$0xff] %vm349, %v320
      %360 = vst.msk [vmem:[#allocation3 + $0x50] sm:$0xff] %vm349, %v322
      %361 = vst.msk [vmem:[#allocation3 + $0x58] sm:$0xff] %vm349, %v324
      %362 = vst.msk [vmem:[#allocation3 + $0x60] sm:$0xff] %vm349, %v326
      %363 = vst.msk [vmem:[#allocation3 + $0x68] sm:$0xff] %vm349, %v328
      %364 = vst.msk [vmem:[#allocation3 + $0x70] sm:$0xff] %vm349, %v330
      %365 = vst.msk [vmem:[#allocation3 + $0x78] sm:$0xff] %vm349, %v332
      %366 = vrot.lane.b32.xlu0 %v191, 63
      %v367 = vpop.permute.xlu0 %366
      %368 = vrot.lane.b32.xlu0 %v196, 63
      %v369 = vpop.permute.xlu0 %368
      %370 = vrot.lane.b32.xlu0 %v201, 63
      %v371 = vpop.permute.xlu0 %370
      %372 = vrot.lane.b32.xlu0 %v206, 63
      %v373 = vpop.permute.xlu0 %372
      %374 = vrot.lane.b32.xlu0 %v211, 63
      %v375 = vpop.permute.xlu0 %374
      %376 = vrot.lane.b32.xlu0 %v216, 63
      %v377 = vpop.permute.xlu0 %376
      %378 = vrot.lane.b32.xlu0 %v221, 63
      %v379 = vpop.permute.xlu0 %378
      %380 = vrot.lane.b32.xlu0 %v226, 63
      %v381 = vpop.permute.xlu0 %380
      %382 = vrot.lane.b32.xlu0 %v231, 63
      %v383 = vpop.permute.xlu0 %382
      %384 = vrot.lane.b32.xlu0 %v236, 63
      %v385 = vpop.permute.xlu0 %384
      %386 = vrot.lane.b32.xlu0 %v241, 63
      %v387 = vpop.permute.xlu0 %386
      %388 = vrot.lane.b32.xlu0 %v246, 63
      %v389 = vpop.permute.xlu0 %388
      %390 = vrot.lane.b32.xlu0 %v251, 63
      %v391 = vpop.permute.xlu0 %390
      %392 = vrot.lane.b32.xlu0 %v256, 63
      %v393 = vpop.permute.xlu0 %392
      %394 = vrot.lane.b32.xlu0 %v261, 63
      %v395 = vpop.permute.xlu0 %394
      %396 = vrot.lane.b32.xlu0 %v266, 63
      %v397 = vpop.permute.xlu0 %396
      %414 = vst.msk [vmem:[#allocation4] sm:$0xff] %vm349, %v367
      %415 = vst.msk [vmem:[#allocation4 + $0x8] sm:$0xff] %vm349, %v369
      %416 = vst.msk [vmem:[#allocation4 + $0x10] sm:$0xff] %vm349, %v371
      %417 = vst.msk [vmem:[#allocation4 + $0x18] sm:$0xff] %vm349, %v373
      %418 = vst.msk [vmem:[#allocation4 + $0x20] sm:$0xff] %vm349, %v375
      %419 = vst.msk [vmem:[#allocation4 + $0x28] sm:$0xff] %vm349, %v377
      %420 = vst.msk [vmem:[#allocation4 + $0x30] sm:$0xff] %vm349, %v379
      %421 = vst.msk [vmem:[#allocation4 + $0x38] sm:$0xff] %vm349, %v381
      %422 = vst.msk [vmem:[#allocation4 + $0x40] sm:$0xff] %vm349, %v383
      %423 = vst.msk [vmem:[#allocation4 + $0x48] sm:$0xff] %vm349, %v385
      %424 = vst.msk [vmem:[#allocation4 + $0x50] sm:$0xff] %vm349, %v387
      %425 = vst.msk [vmem:[#allocation4 + $0x58] sm:$0xff] %vm349, %v389
      %426 = vst.msk [vmem:[#allocation4 + $0x60] sm:$0xff] %vm349, %v391
      %427 = vst.msk [vmem:[#allocation4 + $0x68] sm:$0xff] %vm349, %v393
      %428 = vst.msk [vmem:[#allocation4 + $0x70] sm:$0xff] %vm349, %v395
      %429 = vst.msk [vmem:[#allocation4 + $0x78] sm:$0xff] %vm349, %v397
      %430 = vst [vmem:[#allocation5] sm:$0xff] 0.0
      %431 = vst [vmem:[#allocation5 + $0x8] sm:$0xff] 0.0
      %432 = vst [vmem:[#allocation5 + $0x10] sm:$0xff] 0.0
      %433 = vst [vmem:[#allocation5 + $0x18] sm:$0xff] 0.0
      %434 = vst [vmem:[#allocation5 + $0x20] sm:$0xff] 0.0
      %435 = vst [vmem:[#allocation5 + $0x28] sm:$0xff] 0.0
      %436 = vst [vmem:[#allocation5 + $0x30] sm:$0xff] 0.0
      %437 = vst [vmem:[#allocation5 + $0x38] sm:$0xff] 0.0
      %438 = vst [vmem:[#allocation5 + $0x40] sm:$0xff] 0.0
      %439 = vst [vmem:[#allocation5 + $0x48] sm:$0xff] 0.0
      %440 = vst [vmem:[#allocation5 + $0x50] sm:$0xff] 0.0
      %441 = vst [vmem:[#allocation5 + $0x58] sm:$0xff] 0.0
      %442 = vst [vmem:[#allocation5 + $0x60] sm:$0xff] 0.0
      %443 = vst [vmem:[#allocation5 + $0x68] sm:$0xff] 0.0
      %444 = vst [vmem:[#allocation5 + $0x70] sm:$0xff] 0.0
      %445 = vst [vmem:[#allocation5 + $0x78] sm:$0xff] 0.0
    $region45: #{tpu_custom_call.1} parent=1 // pred_fallthru
      _
    %s446 = smul.u32 0, 128
    %s447 = smul.u32 0, 128
    %s448 = scalar_lea.vmem [#allocation3], %s446
    %v449 = vld [vmem:[%s448] sm:$0xff]
    %v450 = vld [vmem:[%s448 + $0x8] sm:$0xff]
    %v451 = vld [vmem:[%s448 + $0x10] sm:$0xff]
    %v452 = vld [vmem:[%s448 + $0x18] sm:$0xff]
    %v453 = vld [vmem:[%s448 + $0x20] sm:$0xff]
    %v454 = vld [vmem:[%s448 + $0x28] sm:$0xff]
    %v455 = vld [vmem:[%s448 + $0x30] sm:$0xff]
    %v456 = vld [vmem:[%s448 + $0x38] sm:$0xff]
    %v457 = vld [vmem:[%s448 + $0x40] sm:$0xff]
    %v458 = vld [vmem:[%s448 + $0x48] sm:$0xff]
    %v459 = vld [vmem:[%s448 + $0x50] sm:$0xff]
    %v460 = vld [vmem:[%s448 + $0x58] sm:$0xff]
    %v461 = vld [vmem:[%s448 + $0x60] sm:$0xff]
    %v462 = vld [vmem:[%s448 + $0x68] sm:$0xff]
    %v463 = vld [vmem:[%s448 + $0x70] sm:$0xff]
    %v464 = vld [vmem:[%s448 + $0x78] sm:$0xff]
    %s465 = scalar_lea.vmem [#allocation4], %s447
    %v466 = vld [vmem:[%s465] sm:$0xff]
    %v467 = vld [vmem:[%s465 + $0x8] sm:$0xff]
    %v468 = vld [vmem:[%s465 + $0x10] sm:$0xff]
    %v469 = vld [vmem:[%s465 + $0x18] sm:$0xff]
    %v470 = vld [vmem:[%s465 + $0x20] sm:$0xff]
    %v471 = vld [vmem:[%s465 + $0x28] sm:$0xff]
    %v472 = vld [vmem:[%s465 + $0x30] sm:$0xff]
    %v473 = vld [vmem:[%s465 + $0x38] sm:$0xff]
    %v474 = vld [vmem:[%s465 + $0x40] sm:$0xff]
    %v475 = vld [vmem:[%s465 + $0x48] sm:$0xff]
    %v476 = vld [vmem:[%s465 + $0x50] sm:$0xff]
    %v477 = vld [vmem:[%s465 + $0x58] sm:$0xff]
    %v478 = vld [vmem:[%s465 + $0x60] sm:$0xff]
    %v479 = vld [vmem:[%s465 + $0x68] sm:$0xff]
    %v480 = vld [vmem:[%s465 + $0x70] sm:$0xff]
    %v481 = vld [vmem:[%s465 + $0x78] sm:$0xff]
    %482 = vxpose.xlu0.b32.start [1/16] %v466, 128
    %483 = vxpose.xlu0.b32.cont [2/16] %v467, 128
    %484 = vxpose.xlu0.b32.cont [3/16] %v468, 128
    %485 = vxpose.xlu0.b32.cont [4/16] %v469, 128
    %486 = vxpose.xlu0.b32.cont [5/16] %v470, 128
    %487 = vxpose.xlu0.b32.cont [6/16] %v471, 128
    %488 = vxpose.xlu0.b32.cont [7/16] %v472, 128
    %489 = vxpose.xlu0.b32.cont [8/16] %v473, 128
    %490 = vxpose.xlu0.b32.cont [9/16] %v474, 128
    %491 = vxpose.xlu0.b32.cont [10/16] %v475, 128
    %492 = vxpose.xlu0.b32.cont [11/16] %v476, 128
    %493 = vxpose.xlu0.b32.cont [12/16] %v477, 128
    %494 = vxpose.xlu0.b32.cont [13/16] %v478, 128
    %495 = vxpose.xlu0.b32.cont [14/16] %v479, 128
    %496 = vxpose.xlu0.b32.cont [15/16] %v480, 128
    %497 = vxpose.xlu0.b32.end [16/16] %v481, 128
    %v498 = vpop.trf.xlu0
    %v499 = vpop.trf.xlu0
    %v500 = vpop.trf.xlu0
    %v501 = vpop.trf.xlu0
    %v502 = vpop.trf.xlu0
    %v503 = vpop.trf.xlu0
    %v504 = vpop.trf.xlu0
    %v505 = vpop.trf.xlu0
    %v506 = vpop.trf.xlu0
    %v507 = vpop.trf.xlu0
    %v508 = vpop.trf.xlu0
    %v509 = vpop.trf.xlu0
    %v510 = vpop.trf.xlu0
    %v511 = vpop.trf.xlu0
    %v512 = vpop.trf.xlu0
    %v513 = vpop.trf.xlu0
    %515 = vset.pattern.permute.xlu0 0
    %516 = vperm.xlu0 %515, %v449
    %v517 = vpop.permute.xlu0 %516
    %520 = vset.pattern.permute.xlu0 0
    %521 = vperm.xlu0 %520, %v450
    %v522 = vpop.permute.xlu0 %521
    %525 = vset.pattern.permute.xlu0 0
    %526 = vperm.xlu0 %525, %v451
    %v527 = vpop.permute.xlu0 %526
    %530 = vset.pattern.permute.xlu0 0
    %531 = vperm.xlu0 %530, %v452
    %v532 = vpop.permute.xlu0 %531
    %535 = vset.pattern.permute.xlu0 0
    %536 = vperm.xlu0 %535, %v453
    %v537 = vpop.permute.xlu0 %536
    %540 = vset.pattern.permute.xlu0 0
    %541 = vperm.xlu0 %540, %v454
    %v542 = vpop.permute.xlu0 %541
    %545 = vset.pattern.permute.xlu0 0
    %546 = vperm.xlu0 %545, %v455
    %v547 = vpop.permute.xlu0 %546
    %550 = vset.pattern.permute.xlu0 0
    %551 = vperm.xlu0 %550, %v456
    %v552 = vpop.permute.xlu0 %551
    %555 = vset.pattern.permute.xlu0 0
    %556 = vperm.xlu0 %555, %v457
    %v557 = vpop.permute.xlu0 %556
    %560 = vset.pattern.permute.xlu0 0
    %561 = vperm.xlu0 %560, %v458
    %v562 = vpop.permute.xlu0 %561
    %565 = vset.pattern.permute.xlu0 0
    %566 = vperm.xlu0 %565, %v459
    %v567 = vpop.permute.xlu0 %566
    %570 = vset.pattern.permute.xlu0 0
    %571 = vperm.xlu0 %570, %v460
    %v572 = vpop.permute.xlu0 %571
    %575 = vset.pattern.permute.xlu0 0
    %576 = vperm.xlu0 %575, %v461
    %v577 = vpop.permute.xlu0 %576
    %580 = vset.pattern.permute.xlu0 0
    %581 = vperm.xlu0 %580, %v462
    %v582 = vpop.permute.xlu0 %581
    %585 = vset.pattern.permute.xlu0 0
    %586 = vperm.xlu0 %585, %v463
    %v587 = vpop.permute.xlu0 %586
    %590 = vset.pattern.permute.xlu0 0
    %591 = vperm.xlu0 %590, %v464
    %v592 = vpop.permute.xlu0 %591
    %v594 = vlaneseq
    %v595 = vshrl.u32 %v594, 7
    %v596 = vsub.s32 0, %v595
    %v597 = vrot.slane %v498, %v596
    %v598 = vadd.f32 %v517, %v597
    %v599 = vadd.f32 %v522, %v597
    %v600 = vadd.f32 %v527, %v597
    %v601 = vadd.f32 %v532, %v597
    %v602 = vadd.f32 %v537, %v597
    %v603 = vadd.f32 %v542, %v597
    %v604 = vadd.f32 %v547, %v597
    %v605 = vadd.f32 %v552, %v597
    %v606 = vadd.f32 %v557, %v597
    %v607 = vadd.f32 %v562, %v597
    %v608 = vadd.f32 %v567, %v597
    %v609 = vadd.f32 %v572, %v597
    %v610 = vadd.f32 %v577, %v597
    %v611 = vadd.f32 %v582, %v597
    %v612 = vadd.f32 %v587, %v597
    %v613 = vadd.f32 %v592, %v597
    %vm614 = vcmp.ge.f32.partialorder %v598, 0.0
    %vm615 = vcmp.ge.f32.partialorder %v599, 0.0
    %vm616 = vcmp.ge.f32.partialorder %v600, 0.0
    %vm617 = vcmp.ge.f32.partialorder %v601, 0.0
    %vm618 = vcmp.ge.f32.partialorder %v602, 0.0
    %vm619 = vcmp.ge.f32.partialorder %v603, 0.0
    %vm620 = vcmp.ge.f32.partialorder %v604, 0.0
    %vm621 = vcmp.ge.f32.partialorder %v605, 0.0
    %vm622 = vcmp.ge.f32.partialorder %v606, 0.0
    %vm623 = vcmp.ge.f32.partialorder %v607, 0.0
    %vm624 = vcmp.ge.f32.partialorder %v608, 0.0
    %vm625 = vcmp.ge.f32.partialorder %v609, 0.0
    %vm626 = vcmp.ge.f32.partialorder %v610, 0.0
    %vm627 = vcmp.ge.f32.partialorder %v611, 0.0
    %vm628 = vcmp.ge.f32.partialorder %v612, 0.0
    %vm629 = vcmp.ge.f32.partialorder %v613, 0.0
    %v630 = vmul.f32 %v598, 0.01
    %v631 = vmul.f32 %v599, 0.01
    %v632 = vmul.f32 %v600, 0.01
    %v633 = vmul.f32 %v601, 0.01
    %v634 = vmul.f32 %v602, 0.01
    %v635 = vmul.f32 %v603, 0.01
    %v636 = vmul.f32 %v604, 0.01
    %v637 = vmul.f32 %v605, 0.01
    %v638 = vmul.f32 %v606, 0.01
    %v639 = vmul.f32 %v607, 0.01
    %v640 = vmul.f32 %v608, 0.01
    %v641 = vmul.f32 %v609, 0.01
    %v642 = vmul.f32 %v610, 0.01
    %v643 = vmul.f32 %v611, 0.01
    %v644 = vmul.f32 %v612, 0.01
    %v645 = vmul.f32 %v613, 0.01
    %v646 = vsel %vm614, %v598, %v630
    %v647 = vsel %vm615, %v599, %v631
    %v648 = vsel %vm616, %v600, %v632
    %v649 = vsel %vm617, %v601, %v633
    %v650 = vsel %vm618, %v602, %v634
    %v651 = vsel %vm619, %v603, %v635
    %v652 = vsel %vm620, %v604, %v636
    %v653 = vsel %vm621, %v605, %v637
    %v654 = vsel %vm622, %v606, %v638
    %v655 = vsel %vm623, %v607, %v639
    %v656 = vsel %vm624, %v608, %v640
    %v657 = vsel %vm625, %v609, %v641
    %v658 = vsel %vm626, %v610, %v642
    %v659 = vsel %vm627, %v611, %v643
    %v660 = vsel %vm628, %v612, %v644
    %v661 = vsel %vm629, %v613, %v645
    %v662 = vxor.u32 %v646, 2147483648
    %v663 = vxor.u32 %v647, 2147483648
    %v664 = vxor.u32 %v648, 2147483648
    %v665 = vxor.u32 %v649, 2147483648
    %v666 = vxor.u32 %v650, 2147483648
    %v667 = vxor.u32 %v651, 2147483648
    %v668 = vxor.u32 %v652, 2147483648
    %v669 = vxor.u32 %v653, 2147483648
    %v670 = vxor.u32 %v654, 2147483648
    %v671 = vxor.u32 %v655, 2147483648
    %v672 = vxor.u32 %v656, 2147483648
    %v673 = vxor.u32 %v657, 2147483648
    %v674 = vxor.u32 %v658, 2147483648
    %v675 = vxor.u32 %v659, 2147483648
    %v676 = vxor.u32 %v660, 2147483648
    %v677 = vxor.u32 %v661, 2147483648
    %v678 = vmul.f32 %v662, 1.442695
    %v679 = vpow.pop %v678
    %v680 = vmul.f32 %v663, 1.442695
    %v681 = vpow.pop %v680
    %v682 = vmul.f32 %v664, 1.442695
    %v683 = vpow.pop %v682
    %v684 = vmul.f32 %v665, 1.442695
    %v685 = vpow.pop %v684
    %v686 = vmul.f32 %v666, 1.442695
    %v687 = vpow.pop %v686
    %v688 = vmul.f32 %v667, 1.442695
    %v689 = vpow.pop %v688
    %v690 = vmul.f32 %v668, 1.442695
    %v691 = vpow.pop %v690
    %v692 = vmul.f32 %v669, 1.442695
    %v693 = vpow.pop %v692
    %v694 = vmul.f32 %v670, 1.442695
    %v695 = vpow.pop %v694
    %v696 = vmul.f32 %v671, 1.442695
    %v697 = vpow.pop %v696
    %v698 = vmul.f32 %v672, 1.442695
    %v699 = vpow.pop %v698
    %v700 = vmul.f32 %v673, 1.442695
    %v701 = vpow.pop %v700
    %v702 = vmul.f32 %v674, 1.442695
    %v703 = vpow.pop %v702
    %v704 = vmul.f32 %v675, 1.442695
    %v705 = vpow.pop %v704
    %v706 = vmul.f32 %v676, 1.442695
    %v707 = vpow.pop %v706
    %v708 = vmul.f32 %v677, 1.442695
    %v709 = vpow.pop %v708
    %v710 = vadd.f32 %v679, 1.0
    %v711 = vadd.f32 %v681, 1.0
    %v712 = vadd.f32 %v683, 1.0
    %v713 = vadd.f32 %v685, 1.0
    %v714 = vadd.f32 %v687, 1.0
    %v715 = vadd.f32 %v689, 1.0
    %v716 = vadd.f32 %v691, 1.0
    %v717 = vadd.f32 %v693, 1.0
    %v718 = vadd.f32 %v695, 1.0
    %v719 = vadd.f32 %v697, 1.0
    %v720 = vadd.f32 %v699, 1.0
    %v721 = vadd.f32 %v701, 1.0
    %v722 = vadd.f32 %v703, 1.0
    %v723 = vadd.f32 %v705, 1.0
    %v724 = vadd.f32 %v707, 1.0
    %v725 = vadd.f32 %v709, 1.0
    %v726 = vrcp.pop %v710
    %v727 = vmul.f32 1.0, %v726
    %v728 = vrcp.pop %v711
    %v729 = vmul.f32 1.0, %v728
    %v730 = vrcp.pop %v712
    %v731 = vmul.f32 1.0, %v730
    %v732 = vrcp.pop %v713
    %v733 = vmul.f32 1.0, %v732
    %v734 = vrcp.pop %v714
    %v735 = vmul.f32 1.0, %v734
    %v736 = vrcp.pop %v715
    %v737 = vmul.f32 1.0, %v736
    %v738 = vrcp.pop %v716
    %v739 = vmul.f32 1.0, %v738
    %v740 = vrcp.pop %v717
    %v741 = vmul.f32 1.0, %v740
    %v742 = vrcp.pop %v718
    %v743 = vmul.f32 1.0, %v742
    %v744 = vrcp.pop %v719
    %v745 = vmul.f32 1.0, %v744
    %v746 = vrcp.pop %v720
    %v747 = vmul.f32 1.0, %v746
    %v748 = vrcp.pop %v721
    %v749 = vmul.f32 1.0, %v748
    %v750 = vrcp.pop %v722
    %v751 = vmul.f32 1.0, %v750
    %v752 = vrcp.pop %v723
    %v753 = vmul.f32 1.0, %v752
    %v754 = vrcp.pop %v724
    %v755 = vmul.f32 1.0, %v754
    %v756 = vrcp.pop %v725
    %v757 = vmul.f32 1.0, %v756
    %v758 = vld [vmem:[#allocation6] sm:$0xf]
    %v759 = vld [vmem:[#allocation6 + $0x4] sm:$0xf]
    %v760 = vld [vmem:[#allocation6 + $0x8] sm:$0xf]
    %v761 = vld [vmem:[#allocation6 + $0xc] sm:$0xf]
    %v762 = vld [vmem:[#allocation6 + $0x10] sm:$0xf]
    %v763 = vld [vmem:[#allocation6 + $0x14] sm:$0xf]
    %v764 = vld [vmem:[#allocation6 + $0x18] sm:$0xf]
    %v765 = vld [vmem:[#allocation6 + $0x1c] sm:$0xf]
    %v766 = vld [vmem:[#allocation6 + $0x20] sm:$0xf]
    %v767 = vld [vmem:[#allocation6 + $0x24] sm:$0xf]
    %v768 = vld [vmem:[#allocation6 + $0x28] sm:$0xf]
    %v769 = vld [vmem:[#allocation6 + $0x2c] sm:$0xf]
    %v770 = vld [vmem:[#allocation6 + $0x30] sm:$0xf]
    %v771 = vld [vmem:[#allocation6 + $0x34] sm:$0xf]
    %v772 = vld [vmem:[#allocation6 + $0x38] sm:$0xf]
    %v773 = vld [vmem:[#allocation6 + $0x3c] sm:$0xf]
    %v774 = vunpack.c.l.bf16 %v758
    %v775 = vunpack.c.l.bf16 %v759
    %v776 = vunpack.c.l.bf16 %v760
    %v777 = vunpack.c.l.bf16 %v761
    %v778 = vunpack.c.l.bf16 %v762
    %v779 = vunpack.c.l.bf16 %v763
    %v780 = vunpack.c.l.bf16 %v764
    %v781 = vunpack.c.l.bf16 %v765
    %v782 = vunpack.c.l.bf16 %v766
    %v783 = vunpack.c.l.bf16 %v767
    %v784 = vunpack.c.l.bf16 %v768
    %v785 = vunpack.c.l.bf16 %v769
    %v786 = vunpack.c.l.bf16 %v770
    %v787 = vunpack.c.l.bf16 %v771
    %v788 = vunpack.c.l.bf16 %v772
    %v789 = vunpack.c.l.bf16 %v773
    %v790 = vmul.f32 %v727, %v774
    %v791 = vmul.f32 %v729, %v775
    %v792 = vmul.f32 %v731, %v776
    %v793 = vmul.f32 %v733, %v777
    %v794 = vmul.f32 %v735, %v778
    %v795 = vmul.f32 %v737, %v779
    %v796 = vmul.f32 %v739, %v780
    %v797 = vmul.f32 %v741, %v781
    %v798 = vmul.f32 %v743, %v782
    %v799 = vmul.f32 %v745, %v783
    %v800 = vmul.f32 %v747, %v784
    %v801 = vmul.f32 %v749, %v785
    %v802 = vmul.f32 %v751, %v786
    %v803 = vmul.f32 %v753, %v787
    %v804 = vmul.f32 %v755, %v788
    %v805 = vmul.f32 %v757, %v789
    %s806 = scalar_lea.vmem [#allocation2], %s446
    %v807 = vld [vmem:[%s806] sm:$0xff]
    %v808 = vld [vmem:[%s806 + $0x8] sm:$0xff]
    %v809 = vld [vmem:[%s806 + $0x10] sm:$0xff]
    %v810 = vld [vmem:[%s806 + $0x18] sm:$0xff]
    %v811 = vld [vmem:[%s806 + $0x20] sm:$0xff]
    %v812 = vld [vmem:[%s806 + $0x28] sm:$0xff]
    %v813 = vld [vmem:[%s806 + $0x30] sm:$0xff]
    %v814 = vld [vmem:[%s806 + $0x38] sm:$0xff]
    %v815 = vld [vmem:[%s806 + $0x40] sm:$0xff]
    %v816 = vld [vmem:[%s806 + $0x48] sm:$0xff]
    %v817 = vld [vmem:[%s806 + $0x50] sm:$0xff]
    %v818 = vld [vmem:[%s806 + $0x58] sm:$0xff]
    %v819 = vld [vmem:[%s806 + $0x60] sm:$0xff]
    %v820 = vld [vmem:[%s806 + $0x68] sm:$0xff]
    %v821 = vld [vmem:[%s806 + $0x70] sm:$0xff]
    %v822 = vld [vmem:[%s806 + $0x78] sm:$0xff]
    %823 = vxpose.xlu0.b32.start [1/16] %v790, 128
    %824 = vxpose.xlu0.b32.cont [2/16] %v791, 128
    %825 = vxpose.xlu0.b32.cont [3/16] %v792, 128
    %826 = vxpose.xlu0.b32.cont [4/16] %v793, 128
    %827 = vxpose.xlu0.b32.cont [5/16] %v794, 128
    %828 = vxpose.xlu0.b32.cont [6/16] %v795, 128
    %829 = vxpose.xlu0.b32.cont [7/16] %v796, 128
    %830 = vxpose.xlu0.b32.cont [8/16] %v797, 128
    %831 = vxpose.xlu0.b32.cont [9/16] %v798, 128
    %832 = vxpose.xlu0.b32.cont [10/16] %v799, 128
    %833 = vxpose.xlu0.b32.cont [11/16] %v800, 128
    %834 = vxpose.xlu0.b32.cont [12/16] %v801, 128
    %835 = vxpose.xlu0.b32.cont [13/16] %v802, 128
    %836 = vxpose.xlu0.b32.cont [14/16] %v803, 128
    %837 = vxpose.xlu0.b32.cont [15/16] %v804, 128
    %838 = vxpose.xlu0.b32.end [16/16] %v805, 128
    %v839 = vpop.trf.xlu0
    %v840 = vpop.trf.xlu0
    %v841 = vpop.trf.xlu0
    %v842 = vpop.trf.xlu0
    %v843 = vpop.trf.xlu0
    %v844 = vpop.trf.xlu0
    %v845 = vpop.trf.xlu0
    %v846 = vpop.trf.xlu0
    %v847 = vpop.trf.xlu0
    %v848 = vpop.trf.xlu0
    %v849 = vpop.trf.xlu0
    %v850 = vpop.trf.xlu0
    %v851 = vpop.trf.xlu0
    %v852 = vpop.trf.xlu0
    %v853 = vpop.trf.xlu0
    %v854 = vpop.trf.xlu0
    %855 = vmatprep.subr.mxu0 0.0
    %856 = vmatpush1.msra.mxu0 %v807
    %857 = vmatprep.subr.mxu0 0.0
    %858 = vmatpush1.msra.mxu0 %v808
    %859 = vmatprep.subr.mxu0 0.0
    %860 = vmatpush1.msra.mxu0 %v809
    %861 = vmatprep.subr.mxu0 0.0
    %862 = vmatpush1.msra.mxu0 %v810
    %863 = vmatprep.subr.mxu0 0.0
    %864 = vmatpush1.msra.mxu0 %v811
    %865 = vmatprep.subr.mxu0 0.0
    %866 = vmatpush1.msra.mxu0 %v812
    %867 = vmatprep.subr.mxu0 0.0
    %868 = vmatpush1.msra.mxu0 %v813
    %869 = vmatprep.subr.mxu0 0.0
    %870 = vmatpush1.msra.mxu0 %v814
    %871 = vmatprep.subr.mxu0 0.0
    %872 = vmatpush1.msra.mxu0 %v815
    %873 = vmatprep.subr.mxu0 0.0
    %874 = vmatpush1.msra.mxu0 %v816
    %875 = vmatprep.subr.mxu0 0.0
    %876 = vmatpush1.msra.mxu0 %v817
    %877 = vmatprep.subr.mxu0 0.0
    %878 = vmatpush1.msra.mxu0 %v818
    %879 = vmatprep.subr.mxu0 0.0
    %880 = vmatpush1.msra.mxu0 %v819
    %881 = vmatprep.subr.mxu0 0.0
    %882 = vmatpush1.msra.mxu0 %v820
    %883 = vmatprep.subr.mxu0 0.0
    %884 = vmatpush1.msra.mxu0 %v821
    %885 = vmatprep.subr.mxu0 0.0
    %886 = vmatpush1.msra.mxu0 %v822
    %887 = vmatprep.subr.mxu0 0.0
    %888 = vmatpush1.msra.mxu0 0.0
    %889 = vmatprep.subr.mxu0 0.0
    %890 = vmatpush1.msra.mxu0 0.0
    %891 = vmatprep.subr.mxu0 0.0
    %892 = vmatpush1.msra.mxu0 0.0
    %893 = vmatprep.subr.mxu0 0.0
    %894 = vmatpush1.msra.mxu0 0.0
    %895 = vmatprep.subr.mxu0 0.0
    %896 = vmatpush1.msra.mxu0 0.0
    %897 = vmatprep.subr.mxu0 0.0
    %898 = vmatpush1.msra.mxu0 0.0
    %899 = vmatprep.subr.mxu0 0.0
    %900 = vmatpush1.msra.mxu0 0.0
    %901 = vmatprep.subr.mxu0 0.0
    %902 = vmatpush1.msra.mxu0 0.0
    %903 = vmatprep.subr.mxu0 0.0
    %904 = vmatpush1.msra.mxu0 0.0
    %905 = vmatprep.subr.mxu0 0.0
    %906 = vmatpush1.msra.mxu0 0.0
    %907 = vmatprep.subr.mxu0 0.0
    %908 = vmatpush1.msra.mxu0 0.0
    %909 = vmatprep.subr.mxu0 0.0
    %910 = vmatpush1.msra.mxu0 0.0
    %911 = vmatprep.subr.mxu0 0.0
    %912 = vmatpush1.msra.mxu0 0.0
    %913 = vmatprep.subr.mxu0 0.0
    %914 = vmatpush1.msra.mxu0 0.0
    %915 = vmatprep.subr.mxu0 0.0
    %916 = vmatpush1.msra.mxu0 0.0
    %917 = vmatprep.subr.mxu0 0.0
    %918 = vmatpush1.msra.mxu0 0.0
    %919 = vmatprep.mubr.f32.mxu0 0.0
    %920 = vmatmul.mubr.f32.gmra.mrb[0].mxu0 %v839
    %v921 = vpop.f32.mrb[0].mxu0
    %v922 = vadd.f32 0.0, %v921
    %v923 = vpop.f32.mrb[0].mxu0
    %924 = vmatprep.mubr.f32.mxu0 0.0
    %925 = vmatmul.mubr.f32.gmra.mrb[0].mxu0 %v840
    %v926 = vpop.f32.mrb[0].mxu0
    %v927 = vadd.f32 0.0, %v926
    %v928 = vpop.f32.mrb[0].mxu0
    %929 = vmatprep.mubr.f32.mxu0 0.0
    %930 = vmatmul.mubr.f32.gmra.mrb[0].mxu0 %v841
    %v931 = vpop.f32.mrb[0].mxu0
    %v932 = vadd.f32 0.0, %v931
    %v933 = vpop.f32.mrb[0].mxu0
    %934 = vmatprep.mubr.f32.mxu0 0.0
    %935 = vmatmul.mubr.f32.gmra.mrb[0].mxu0 %v842
    %v936 = vpop.f32.mrb[0].mxu0
    %v937 = vadd.f32 0.0, %v936
    %v938 = vpop.f32.mrb[0].mxu0
    %939 = vmatprep.mubr.f32.mxu0 0.0
    %940 = vmatmul.mubr.f32.gmra.mrb[0].mxu0 %v843
    %v941 = vpop.f32.mrb[0].mxu0
    %v942 = vadd.f32 0.0, %v941
    %v943 = vpop.f32.mrb[0].mxu0
    %944 = vmatprep.mubr.f32.mxu0 0.0
    %945 = vmatmul.mubr.f32.gmra.mrb[0].mxu0 %v844
    %v946 = vpop.f32.mrb[0].mxu0
    %v947 = vadd.f32 0.0, %v946
    %v948 = vpop.f32.mrb[0].mxu0
    %949 = vmatprep.mubr.f32.mxu0 0.0
    %950 = vmatmul.mubr.f32.gmra.mrb[0].mxu0 %v845
    %v951 = vpop.f32.mrb[0].mxu0
    %v952 = vadd.f32 0.0, %v951
    %v953 = vpop.f32.mrb[0].mxu0
    %954 = vmatprep.mubr.f32.mxu0 0.0
    %955 = vmatmul.mubr.f32.gmra.mrb[0].mxu0 %v846
    %v956 = vpop.f32.mrb[0].mxu0
    %v957 = vadd.f32 0.0, %v956
    %v958 = vpop.f32.mrb[0].mxu0
    %959 = vmatprep.mubr.f32.mxu0 0.0
    %960 = vmatmul.mubr.f32.gmra.mrb[0].mxu0 %v847
    %v961 = vpop.f32.mrb[0].mxu0
    %v962 = vadd.f32 0.0, %v961
    %v963 = vpop.f32.mrb[0].mxu0
    %964 = vmatprep.mubr.f32.mxu0 0.0
    %965 = vmatmul.mubr.f32.gmra.mrb[0].mxu0 %v848
    %v966 = vpop.f32.mrb[0].mxu0
    %v967 = vadd.f32 0.0, %v966
    %v968 = vpop.f32.mrb[0].mxu0
    %969 = vmatprep.mubr.f32.mxu0 0.0
    %970 = vmatmul.mubr.f32.gmra.mrb[0].mxu0 %v849
    %v971 = vpop.f32.mrb[0].mxu0
    %v972 = vadd.f32 0.0, %v971
    %v973 = vpop.f32.mrb[0].mxu0
    %974 = vmatprep.mubr.f32.mxu0 0.0
    %975 = vmatmul.mubr.f32.gmra.mrb[0].mxu0 %v850
    %v976 = vpop.f32.mrb[0].mxu0
    %v977 = vadd.f32 0.0, %v976
    %v978 = vpop.f32.mrb[0].mxu0
    %979 = vmatprep.mubr.f32.mxu0 0.0
    %980 = vmatmul.mubr.f32.gmra.mrb[0].mxu0 %v851
    %v981 = vpop.f32.mrb[0].mxu0
    %v982 = vadd.f32 0.0, %v981
    %v983 = vpop.f32.mrb[0].mxu0
    %984 = vmatprep.mubr.f32.mxu0 0.0
    %985 = vmatmul.mubr.f32.gmra.mrb[0].mxu0 %v852
    %v986 = vpop.f32.mrb[0].mxu0
    %v987 = vadd.f32 0.0, %v986
    %v988 = vpop.f32.mrb[0].mxu0
    %989 = vmatprep.mubr.f32.mxu0 0.0
    %990 = vmatmul.mubr.f32.gmra.mrb[0].mxu0 %v853
    %v991 = vpop.f32.mrb[0].mxu0
    %v992 = vadd.f32 0.0, %v991
    %v993 = vpop.f32.mrb[0].mxu0
    %994 = vmatprep.mubr.f32.mxu0 0.0
    %995 = vmatmul.mubr.f32.gmra.mrb[0].mxu0 %v854
    %v996 = vpop.f32.mrb[0].mxu0
    %v997 = vadd.f32 0.0, %v996
    %v998 = vpop.f32.mrb[0].mxu0
    %999 = vdwg.mxu0
    %s1000 = scalar_lea.vmem [#allocation5], %s447
    %v1001 = vld [vmem:[%s1000] sm:$0xff]
    %v1002 = vld [vmem:[%s1000 + $0x8] sm:$0xff]
    %v1003 = vld [vmem:[%s1000 + $0x10] sm:$0xff]
    %v1004 = vld [vmem:[%s1000 + $0x18] sm:$0xff]
    %v1005 = vld [vmem:[%s1000 + $0x20] sm:$0xff]
    %v1006 = vld [vmem:[%s1000 + $0x28] sm:$0xff]
    %v1007 = vld [vmem:[%s1000 + $0x30] sm:$0xff]
    %v1008 = vld [vmem:[%s1000 + $0x38] sm:$0xff]
    %v1009 = vld [vmem:[%s1000 + $0x40] sm:$0xff]
    %v1010 = vld [vmem:[%s1000 + $0x48] sm:$0xff]
    %v1011 = vld [vmem:[%s1000 + $0x50] sm:$0xff]
    %v1012 = vld [vmem:[%s1000 + $0x58] sm:$0xff]
    %v1013 = vld [vmem:[%s1000 + $0x60] sm:$0xff]
    %v1014 = vld [vmem:[%s1000 + $0x68] sm:$0xff]
    %v1015 = vld [vmem:[%s1000 + $0x70] sm:$0xff]
    %v1016 = vld [vmem:[%s1000 + $0x78] sm:$0xff]
    %v1017 = vadd.f32 %v1001, %v922
    %v1018 = vadd.f32 %v1002, %v927
    %v1019 = vadd.f32 %v1003, %v932
    %v1020 = vadd.f32 %v1004, %v937
    %v1021 = vadd.f32 %v1005, %v942
    %v1022 = vadd.f32 %v1006, %v947
    %v1023 = vadd.f32 %v1007, %v952
    %v1024 = vadd.f32 %v1008, %v957
    %v1025 = vadd.f32 %v1009, %v962
    %v1026 = vadd.f32 %v1010, %v967
    %v1027 = vadd.f32 %v1011, %v972
    %v1028 = vadd.f32 %v1012, %v977
    %v1029 = vadd.f32 %v1013, %v982
    %v1030 = vadd.f32 %v1014, %v987
    %v1031 = vadd.f32 %v1015, %v992
    %v1032 = vadd.f32 %v1016, %v997
    %1033 = vst [vmem:[%s1000] sm:$0xff] %v1017
    %1034 = vst [vmem:[%s1000 + $0x8] sm:$0xff] %v1018
    %1035 = vst [vmem:[%s1000 + $0x10] sm:$0xff] %v1019
    %1036 = vst [vmem:[%s1000 + $0x18] sm:$0xff] %v1020
    %1037 = vst [vmem:[%s1000 + $0x20] sm:$0xff] %v1021
    %1038 = vst [vmem:[%s1000 + $0x28] sm:$0xff] %v1022
    %1039 = vst [vmem:[%s1000 + $0x30] sm:$0xff] %v1023
    %1040 = vst [vmem:[%s1000 + $0x38] sm:$0xff] %v1024
    %1041 = vst [vmem:[%s1000 + $0x40] sm:$0xff] %v1025
    %1042 = vst [vmem:[%s1000 + $0x48] sm:$0xff] %v1026
    %1043 = vst [vmem:[%s1000 + $0x50] sm:$0xff] %v1027
    %1044 = vst [vmem:[%s1000 + $0x58] sm:$0xff] %v1028
    %1045 = vst [vmem:[%s1000 + $0x60] sm:$0xff] %v1029
    %1046 = vst [vmem:[%s1000 + $0x68] sm:$0xff] %v1030
    %1047 = vst [vmem:[%s1000 + $0x70] sm:$0xff] %v1031
    %1048 = vst [vmem:[%s1000 + $0x78] sm:$0xff] %v1032
    // Predicated region
    $region46: #{tpu_custom_call.1} parent=1 // pred_check
      _
    $region47: #{tpu_custom_call.1} parent=1 // pred_check_branch
      %1050 = sbr.rel (%p49) target = $region49
    $region48: #{tpu_custom_call.1} parent=1 // pred_region
      %v1051 = vlaneseq
      %v1052 = vand.u32 %v1051, 127
      %v1053 = vld [vmem:[%s0] sm:$0xff]
      %1054 = vset.pattern.permute.xlu0 0
      %1055 = vperm.xlu0 %1054, %v1053
      %v1056 = vpop.permute.xlu0 %1055
      %vm1057 = vcmp.eq.s32.totalorder %v1052, %v1056
      %v1058 = vsel %vm1057, 1, 0
      %v1059 = vcvt.s32.f32 %v1058
      %v1060 = vld [vmem:[#allocation5] sm:$0xff]
      %v1061 = vld [vmem:[#allocation5 + $0x8] sm:$0xff]
      %v1062 = vld [vmem:[#allocation5 + $0x10] sm:$0xff]
      %v1063 = vld [vmem:[#allocation5 + $0x18] sm:$0xff]
      %v1064 = vld [vmem:[#allocation5 + $0x20] sm:$0xff]
      %v1065 = vld [vmem:[#allocation5 + $0x28] sm:$0xff]
      %v1066 = vld [vmem:[#allocation5 + $0x30] sm:$0xff]
      %v1067 = vld [vmem:[#allocation5 + $0x38] sm:$0xff]
      %v1068 = vld [vmem:[#allocation5 + $0x40] sm:$0xff]
      %v1069 = vld [vmem:[#allocation5 + $0x48] sm:$0xff]
      %v1070 = vld [vmem:[#allocation5 + $0x50] sm:$0xff]
      %v1071 = vld [vmem:[#allocation5 + $0x58] sm:$0xff]
      %v1072 = vld [vmem:[#allocation5 + $0x60] sm:$0xff]
      %v1073 = vld [vmem:[#allocation5 + $0x68] sm:$0xff]
      %v1074 = vld [vmem:[#allocation5 + $0x70] sm:$0xff]
      %v1075 = vld [vmem:[#allocation5 + $0x78] sm:$0xff]
      %1076 = vmatprep.subr.mxu0 0.0
      %1077 = vmatpush1.msra.mxu0 %v1060
      %1078 = vmatprep.subr.mxu0 0.0
      %1079 = vmatpush1.msra.mxu0 %v1061
      %1080 = vmatprep.subr.mxu0 0.0
      %1081 = vmatpush1.msra.mxu0 %v1062
      %1082 = vmatprep.subr.mxu0 0.0
      %1083 = vmatpush1.msra.mxu0 %v1063
      %1084 = vmatprep.subr.mxu0 0.0
      %1085 = vmatpush1.msra.mxu0 %v1064
      %1086 = vmatprep.subr.mxu0 0.0
      %1087 = vmatpush1.msra.mxu0 %v1065
      %1088 = vmatprep.subr.mxu0 0.0
      %1089 = vmatpush1.msra.mxu0 %v1066
      %1090 = vmatprep.subr.mxu0 0.0
      %1091 = vmatpush1.msra.mxu0 %v1067
      %1092 = vmatprep.subr.mxu0 0.0
      %1093 = vmatpush1.msra.mxu0 %v1068
      %1094 = vmatprep.subr.mxu0 0.0
      %1095 = vmatpush1.msra.mxu0 %v1069
      %1096 = vmatprep.subr.mxu0 0.0
      %1097 = vmatpush1.msra.mxu0 %v1070
      %1098 = vmatprep.subr.mxu0 0.0
      %1099 = vmatpush1.msra.mxu0 %v1071
      %1100 = vmatprep.subr.mxu0 0.0
      %1101 = vmatpush1.msra.mxu0 %v1072
      %1102 = vmatprep.subr.mxu0 0.0
      %1103 = vmatpush1.msra.mxu0 %v1073
      %1104 = vmatprep.subr.mxu0 0.0
      %1105 = vmatpush1.msra.mxu0 %v1074
      %1106 = vmatprep.subr.mxu0 0.0
      %1107 = vmatpush1.msra.mxu0 %v1075
      %1108 = vmatprep.subr.mxu0 0.0
      %1109 = vmatpush1.msra.mxu0 0.0
      %1110 = vmatprep.subr.mxu0 0.0
      %1111 = vmatpush1.msra.mxu0 0.0
      %1112 = vmatprep.subr.mxu0 0.0
      %1113 = vmatpush1.msra.mxu0 0.0
      %1114 = vmatprep.subr.mxu0 0.0
      %1115 = vmatpush1.msra.mxu0 0.0
      %1116 = vmatprep.subr.mxu0 0.0
      %1117 = vmatpush1.msra.mxu0 0.0
      %1118 = vmatprep.subr.mxu0 0.0
      %1119 = vmatpush1.msra.mxu0 0.0
      %1120 = vmatprep.subr.mxu0 0.0
      %1121 = vmatpush1.msra.mxu0 0.0
      %1122 = vmatprep.subr.mxu0 0.0
      %1123 = vmatpush1.msra.mxu0 0.0
      %1124 = vmatprep.subr.mxu0 0.0
      %1125 = vmatpush1.msra.mxu0 0.0
      %1126 = vmatprep.subr.mxu0 0.0
      %1127 = vmatpush1.msra.mxu0 0.0
      %1128 = vmatprep.subr.mxu0 0.0
      %1129 = vmatpush1.msra.mxu0 0.0
      %1130 = vmatprep.subr.mxu0 0.0
      %1131 = vmatpush1.msra.mxu0 0.0
      %1132 = vmatprep.subr.mxu0 0.0
      %1133 = vmatpush1.msra.mxu0 0.0
      %1134 = vmatprep.subr.mxu0 0.0
      %1135 = vmatpush1.msra.mxu0 0.0
      %1136 = vmatprep.subr.mxu0 0.0
      %1137 = vmatpush1.msra.mxu0 0.0
      %1138 = vmatprep.subr.mxu0 0.0
      %1139 = vmatpush1.msra.mxu0 0.0
      %1140 = vmatprep.mubr.f32.mxu0 0.0
      %1141 = vmatmul.mubr.f32.gmra.mrb[0].mxu0 %v1059
      %v1142 = vpop.f32.mrb[0].mxu0
      %v1143 = vadd.f32 0.0, %v1142
      %v1144 = vpop.f32.mrb[0].mxu0
      %1145 = vdwg.mxu0
      %v1146 = vrot.slane %v1143, 4
      %v1147 = vadd.f32 %v1143, %v1146
      %v1148 = vrot.slane %v1147, 2
      %v1149 = vadd.f32 %v1147, %v1148
      %v1150 = vrot.slane %v1149, 1
      %v1151 = vadd.f32 %v1149, %v1150
      %v1152 = vrcp.pop 8.0
      %v1153 = vmul.f32 %v1151, %v1152
      %v1154 = vsub.f32 %v1143, %v1153
      %v1155 = vmul.f32 %v1154, %v1154
      %v1156 = vrot.slane %v1155, 4
      %v1157 = vadd.f32 %v1155, %v1156
      %v1158 = vrot.slane %v1157, 2
      %v1159 = vadd.f32 %v1157, %v1158
      %v1160 = vrot.slane %v1159, 1
      %v1161 = vadd.f32 %v1159, %v1160
      %v1162 = vmul.f32 %v1161, %v1152
      %v1163 = vadd.f32 %v1162, 1e-05
      %v1164 = vrsqrt.pop %v1163
      %v1165 = vmul.f32 %v1154, %v1164
      %v1166 = vld [vmem:[%s4] sm:$0x1]
      %v1168 = vlaneseq
      %v1169 = vshrl.u32 %v1168, 7
      %v1170 = vsub.s32 0, %v1169
      %v1171 = vrot.slane %v1166, %v1170
      %v1173 = vmul.f32 %v1165, %v1171
      %v1174 = vld [vmem:[%s5] sm:$0x1]
      %v1176 = vlaneseq
      %v1177 = vshrl.u32 %v1176, 7
      %v1178 = vsub.s32 0, %v1177
      %v1179 = vrot.slane %v1174, %v1178
      %v1181 = vadd.f32 %v1173, %v1179
      %v1182 = vmax.f32 %v1181, 0.0
      %v1183 = vld [vmem:[%s6] sm:$0xff]
      %v1184 = vld [vmem:[%s6 + $0x8] sm:$0xff]
      %v1185 = vld [vmem:[%s6 + $0x10] sm:$0xff]
      %v1186 = vld [vmem:[%s6 + $0x18] sm:$0xff]
      %v1187 = vld [vmem:[%s6 + $0x20] sm:$0xff]
      %v1188 = vld [vmem:[%s6 + $0x28] sm:$0xff]
      %v1189 = vld [vmem:[%s6 + $0x30] sm:$0xff]
      %v1190 = vld [vmem:[%s6 + $0x38] sm:$0xff]
      %v1191 = vld [vmem:[%s6 + $0x40] sm:$0xff]
      %v1192 = vld [vmem:[%s6 + $0x48] sm:$0xff]
      %v1193 = vld [vmem:[%s6 + $0x50] sm:$0xff]
      %v1194 = vld [vmem:[%s6 + $0x58] sm:$0xff]
      %v1195 = vld [vmem:[%s6 + $0x60] sm:$0xff]
      %v1196 = vld [vmem:[%s6 + $0x68] sm:$0xff]
      %v1197 = vld [vmem:[%s6 + $0x70] sm:$0xff]
      %v1198 = vld [vmem:[%s6 + $0x78] sm:$0xff]
      %1199 = vmatprep.subr.mxu0 0.0
      %1200 = vmatpush1.msra.mxu0 %v1183
      %1201 = vmatprep.subr.mxu0 0.0
      %1202 = vmatpush1.msra.mxu0 %v1184
      %1203 = vmatprep.subr.mxu0 0.0
      %1204 = vmatpush1.msra.mxu0 %v1185
      %1205 = vmatprep.subr.mxu0 0.0
      %1206 = vmatpush1.msra.mxu0 %v1186
      %1207 = vmatprep.subr.mxu0 0.0
      %1208 = vmatpush1.msra.mxu0 %v1187
      %1209 = vmatprep.subr.mxu0 0.0
      %1210 = vmatpush1.msra.mxu0 %v1188
      %1211 = vmatprep.subr.mxu0 0.0
      %1212 = vmatpush1.msra.mxu0 %v1189
      %1213 = vmatprep.subr.mxu0 0.0
      %1214 = vmatpush1.msra.mxu0 %v1190
      %1215 = vmatprep.subr.mxu0 0.0
      %1216 = vmatpush1.msra.mxu0 %v1191
      %1217 = vmatprep.subr.mxu0 0.0
      %1218 = vmatpush1.msra.mxu0 %v1192
      %1219 = vmatprep.subr.mxu0 0.0
      %1220 = vmatpush1.msra.mxu0 %v1193
      %1221 = vmatprep.subr.mxu0 0.0
      %1222 = vmatpush1.msra.mxu0 %v1194
      %1223 = vmatprep.subr.mxu0 0.0
      %1224 = vmatpush1.msra.mxu0 %v1195
      %1225 = vmatprep.subr.mxu0 0.0
      %1226 = vmatpush1.msra.mxu0 %v1196
      %1227 = vmatprep.subr.mxu0 0.0
      %1228 = vmatpush1.msra.mxu0 %v1197
      %1229 = vmatprep.subr.mxu0 0.0
      %1230 = vmatpush1.msra.mxu0 %v1198
      %1231 = vmatprep.subr.mxu0 0.0
      %1232 = vmatpush1.msra.mxu0 0.0
      %1233 = vmatprep.subr.mxu0 0.0
      %1234 = vmatpush1.msra.mxu0 0.0
      %1235 = vmatprep.subr.mxu0 0.0
      %1236 = vmatpush1.msra.mxu0 0.0
      %1237 = vmatprep.subr.mxu0 0.0
      %1238 = vmatpush1.msra.mxu0 0.0
      %1239 = vmatprep.subr.mxu0 0.0
      %1240 = vmatpush1.msra.mxu0 0.0
      %1241 = vmatprep.subr.mxu0 0.0
      %1242 = vmatpush1.msra.mxu0 0.0
      %1243 = vmatprep.subr.mxu0 0.0
      %1244 = vmatpush1.msra.mxu0 0.0
      %1245 = vmatprep.subr.mxu0 0.0
      %1246 = vmatpush1.msra.mxu0 0.0
      %1247 = vmatprep.subr.mxu0 0.0
      %1248 = vmatpush1.msra.mxu0 0.0
      %1249 = vmatprep.subr.mxu0 0.0
      %1250 = vmatpush1.msra.mxu0 0.0
      %1251 = vmatprep.subr.mxu0 0.0
      %1252 = vmatpush1.msra.mxu0 0.0
      %1253 = vmatprep.subr.mxu0 0.0
      %1254 = vmatpush1.msra.mxu0 0.0
      %1255 = vmatprep.subr.mxu0 0.0
      %1256 = vmatpush1.msra.mxu0 0.0
      %1257 = vmatprep.subr.mxu0 0.0
      %1258 = vmatpush1.msra.mxu0 0.0
      %1259 = vmatprep.subr.mxu0 0.0
      %1260 = vmatpush1.msra.mxu0 0.0
      %1261 = vmatprep.subr.mxu0 0.0
      %1262 = vmatpush1.msra.mxu0 0.0
      %1263 = vmatprep.mubr.f32.mxu0 0.0
      %1264 = vmatmul.mubr.f32.gmra.mrb[0].mxu0 %v1182
      %v1265 = vpop.f32.mrb[0].mxu0
      %v1266 = vadd.f32 0.0, %v1265
      %v1267 = vpop.f32.mrb[0].mxu0
      %1268 = vdwg.mxu0
      %v1269 = vrot.slane %v1266, 4
      %v1270 = vadd.f32 %v1266, %v1269
      %v1271 = vrot.slane %v1270, 2
      %v1272 = vadd.f32 %v1270, %v1271
      %v1273 = vrot.slane %v1272, 1
      %v1274 = vadd.f32 %v1272, %v1273
      %v1275 = vmul.f32 %v1274, %v1152
      %v1276 = vsub.f32 %v1266, %v1275
      %v1277 = vmul.f32 %v1276, %v1276
      %v1278 = vrot.slane %v1277, 4
      %v1279 = vadd.f32 %v1277, %v1278
      %v1280 = vrot.slane %v1279, 2
      %v1281 = vadd.f32 %v1279, %v1280
      %v1282 = vrot.slane %v1281, 1
      %v1283 = vadd.f32 %v1281, %v1282
      %v1284 = vmul.f32 %v1283, %v1152
      %v1285 = vadd.f32 %v1284, 1e-05
      %v1286 = vrsqrt.pop %v1285
      %v1287 = vmul.f32 %v1276, %v1286
      %v1288 = vld [vmem:[%s7] sm:$0x1]
      %v1290 = vlaneseq
      %v1291 = vshrl.u32 %v1290, 7
      %v1292 = vsub.s32 0, %v1291
      %v1293 = vrot.slane %v1288, %v1292
      %v1295 = vmul.f32 %v1287, %v1293
      %v1296 = vld [vmem:[%s8] sm:$0x1]
      %v1298 = vlaneseq
      %v1299 = vshrl.u32 %v1298, 7
      %v1300 = vsub.s32 0, %v1299
      %v1301 = vrot.slane %v1296, %v1300
      %v1303 = vadd.f32 %v1295, %v1301
      %v1304 = vmax.f32 %v1303, 0.0
      %1305 = vst [vmem:[#allocation9] sm:$0xff] %v1304
    $region49: #{tpu_custom_call.1} parent=1 // pred_fallthru
      _
    // Predicated region
    $region50: #{tpu_custom_call.1} parent=1 // pred_check
      _
    $region51: #{tpu_custom_call.1} parent=1 // pred_check_branch
      %1307 = sbr.rel (0) target = $region53
    $region52: #{tpu_custom_call.1} parent=1 // pred_region
      %s1309 = ssub.s32 128, 128
      %1310 = vsyncadd [#allocation8], %s1309
      %s1312 = sshll.u32 [#allocation9], 4
      %s1313 = int_to_ptr.vmem [resolvable:$true] %s1312
      %1315 = dma.vmem_to_hbm [thread:$0]  %s1313, 128, %s9, [#allocation8]
    $region53: #{tpu_custom_call.1} parent=1 // pred_fallthru
      _
    // Predicated region
    $region54: #{tpu_custom_call.1} parent=1 // pred_check
      _
    $region55: #{tpu_custom_call.1} parent=1 // pred_check_branch
      %1317 = sbr.rel (0) target = $region57
    $region56: #{tpu_custom_call.1} parent=1 // pred_region
      %1318 = dma.done [#allocation8], 128
    $region57: #{tpu_custom_call.1} parent=1 // pred_fallthru
      _
    %1319 = vsyncpa [#allocation7], 1
    %1320 = vsyncpa [#allocation8], 1

</llo_original>
